<compile_context>
chip_gen: v5e
topology: v5e:2x2
jax: 0.10.0
libtpu: 0.0.40
codegen_flags: <defaults>
</compile_context>

<pallas_src>
import functools
import math

import jax
import jax.numpy as jnp
from jax.experimental import pallas as pl
from jax.experimental.pallas import tpu as pltpu  # noqa: F401 (kept for TPU-specific tuning hooks)

# ----------------------------- configuration -----------------------------
BATCH = 2
HIDDEN = 32
NUM_HEADS = 1                      # GCT uses single-head attention
NUM_STACKS = 3
MAX_NUM_CODES = 8
NUM_CODES = 1 + 2 * MAX_NUM_CODES  # visit + dx + proc = 17
NUM_LABELS = 2
VOCAB_DX = 20
VOCAB_PROC = 15
PRIOR_SCALAR = 0.5
REG_COEF = 0.1
USE_PRIOR = True
USE_GUIDE = True
LN_EPS = 1e-5
HEAD_SIZE = HIDDEN // NUM_HEADS
LANE = 128                         # lane-dense width for the probs export


# ----------------------------- kernel helpers -----------------------------
def _layernorm(x, gamma, beta):
    mean = jnp.mean(x, axis=-1, keepdims=True)
    var = jnp.mean(jnp.square(x - mean), axis=-1, keepdims=True)
    return (x - mean) * jax.lax.rsqrt(var + LN_EPS) * gamma + beta


# ----------------------------- fused Pallas kernel -----------------------------
def gct_fused_kernel(h_ref, mask_ref, prior_ref,
                     sw_ref, sb_ref, hw_ref, hb_ref,
                     hs_ref, probs_ref, logits_ref,
                     *, inv_scale, batch, seq, num_stacks, use_prior, lane_width):
    S = seq
    # ---- Embedding LayerNorm on the whole (B*S, H) slab (batch folded into rows).
    x = _layernorm(h_ref[...].astype(jnp.float32), hb_ref[0], hb_ref[1])
    hs_ref[0] = x.astype(hs_ref.dtype)

    # Zero lane padding reused for every lane-dense probs store (hoisted constant).
    lane_pad = jnp.zeros((S, lane_width - S), jnp.float32)

    # ---- GCT stacks.  Packed weights are VMEM-resident across the whole loop.
    for i in range(num_stacks):
        wq, wk, wv, wd = sw_ref[i, 0], sw_ref[i, 1], sw_ref[i, 2], sw_ref[i, 3]
        bq, bk, bv, bd = sb_ref[i, 0], sb_ref[i, 1], sb_ref[i, 2], sb_ref[i, 3]
        gamma, beta = sb_ref[i, 4], sb_ref[i, 5]

        prior_layer = use_prior and i == 0
        # Projections on the folded (B*S, H) slab: one MXU round each instead of B.
        v_all = jnp.dot(x, wv, preferred_element_type=jnp.float32) + bv
        if not prior_layer:
            # Stack 0 uses the conditional prior directly as attention probs,
            # so Q/K are never computed there (matches the PyTorch reference).
            q_all = jnp.dot(x, wq, preferred_element_type=jnp.float32) + bq
            k_all = jnp.dot(x, wk, preferred_element_type=jnp.float32) + bk

        ctx_blocks = []
        for b in range(batch):                       # B=2, unrolled at trace time
            r0 = b * S
            v_b = v_all[r0:r0 + S, :]
            if prior_layer:
                probs = prior_ref[b].astype(jnp.float32)                 # (S, S)
            else:
                q_b = q_all[r0:r0 + S, :]
                k_b = k_all[r0:r0 + S, :]
                # q @ k^T without materializing an explicit transpose.
                s = jax.lax.dot_general(
                    q_b, k_b, (((1,), (1,)), ((), ())),
                    preferred_element_type=jnp.float32) * inv_scale
                s = s + mask_ref[b]                                      # additive key mask (1, S)
                s = s - jnp.max(s, axis=-1, keepdims=True)
                e = jnp.exp(s)
                probs = e * pl.reciprocal(jnp.sum(e, axis=-1, keepdims=True),
                                          approx=False)
            # Lane-dense export: pad (S, S) -> (S, 128) with zeros so the HBM
            # writeback is an unmasked full-lane store.
            probs_ref[i, b] = jnp.concatenate([probs, lane_pad],
                                              axis=-1).astype(probs_ref.dtype)
            ctx_blocks.append(jnp.dot(probs, v_b, preferred_element_type=jnp.float32))

        ctx = jnp.concatenate(ctx_blocks, axis=0)                        # back to (B*S, H) slab
        dense = jnp.maximum(jnp.dot(ctx, wd, preferred_element_type=jnp.float32) + bd,
                            0.0)                                          # ReLU
        x = _layernorm(dense + x, gamma, beta)                            # residual LN
        hs_ref[i + 1] = x.astype(hs_ref.dtype)

    # ---- Pooler (first token per batch) + classifier, fused tail.
    first = jnp.concatenate([x[b * S:b * S + 1, :] for b in range(batch)], axis=0)  # (B, H)
    pooled = jnp.maximum(
        jnp.dot(first, hw_ref[0], preferred_element_type=jnp.float32) + hb_ref[2], 0.0)
    # Classifier weight/bias are zero-padded to H lanes; real logits live in the
    # first NUM_LABELS lanes and are sliced out in the JAX glue.
    logits_ref[...] = (jnp.dot(pooled, hw_ref[1], preferred_element_type=jnp.float32)
                       + hb_ref[3]).astype(logits_ref.dtype)


def gct_fused_forward(hidden_flat, ext_mask, prior_guide, params):
    """Single gridless pallas_call: everything lands in VMEM once."""
    BS, H = hidden_flat.shape
    B = ext_mask.shape[0]
    S = BS // B
    operands = (hidden_flat, ext_mask, prior_guide,
                params['stack_w'], params['stack_b'],
                params['head_w'], params['head_b'])
    out_shape = (jax.ShapeDtypeStruct((NUM_STACKS + 1, BS, H), jnp.float32),
                 jax.ShapeDtypeStruct((NUM_STACKS, B, S, LANE), jnp.float32),
                 jax.ShapeDtypeStruct((B, H), jnp.float32))

    # Cost hint so XLA overlaps surrounding glue with the kernel prologue DMAs.
    flops = NUM_STACKS * (8 * BS * H * H + 4 * B * S * S * H) + 4 * B * H * H
    transcendentals = (NUM_STACKS - 1) * B * S * S + (NUM_STACKS + 1) * BS
    bytes_accessed = 4 * (sum(math.prod(a.shape) for a in operands)
                          + sum(math.prod(o.shape) for o in out_shape))
    cost = pl.CostEstimate(flops=flops, transcendentals=transcendentals,
                           bytes_accessed=bytes_accessed)

    kernel = functools.partial(
        gct_fused_kernel,
        inv_scale=1.0 / math.sqrt(HEAD_SIZE),
        batch=B, seq=S, num_stacks=NUM_STACKS,
        use_prior=USE_PRIOR, lane_width=LANE)
    return pl.pallas_call(kernel, out_shape=out_shape, cost_estimate=cost)(*operands)


# ----------------------------- glue (plain JAX) -----------------------------
def create_matrix_vdp(masks, prior_dense):
    """Reproduces GraphConvolutionalTransformer.create_matrix_vdp."""
    B = masks.shape[0]
    M = MAX_NUM_CODES
    nc = NUM_CODES
    guide = None
    if USE_GUIDE:
        row0 = jnp.concatenate([jnp.zeros((1, 1)), jnp.ones((1, M)), jnp.zeros((1, M))], axis=1)
        row1 = jnp.concatenate([jnp.zeros((M, M + 1)), jnp.ones((M, M))], axis=1)
        row2 = jnp.zeros((M, nc))
        g = jnp.concatenate([row0, row1, row2], axis=0)
        g = g + g.T
        g = jnp.broadcast_to(g[None], (B, nc, nc))
        guide = g * masks[:, :, None] * masks[:, None, :] + jnp.eye(nc)[None]
    prior_guide = None
    if USE_PRIOR:
        visit_guide = jnp.concatenate([jnp.full((M,), PRIOR_SCALAR, jnp.float32),
                                       jnp.zeros((M,), jnp.float32)], axis=0)      # (2M,)
        pg = jnp.concatenate([jnp.broadcast_to(visit_guide[None, None, :], (B, 1, 2 * M)),
                              prior_dense], axis=1)                                 # (B, nc, 2M)
        visit_guide2 = jnp.concatenate([jnp.zeros((1,), jnp.float32), visit_guide], axis=0)
        pg = jnp.concatenate([jnp.broadcast_to(visit_guide2[None, :, None], (B, nc, 1)),
                              pg], axis=2)                                          # (B, nc, nc)
        pg = pg * masks[:, :, None] * masks[:, None, :] + PRIOR_SCALAR * jnp.eye(nc)[None]
        degrees = jnp.sum(pg, axis=2)
        prior_guide = pg / degrees[:, :, None]
    return guide, prior_guide


def get_loss(logits, labels, attentions):
    logp = jax.nn.log_softmax(logits, axis=-1)
    loss = -jnp.mean(jnp.take_along_axis(logp, labels[:, None], axis=1))
    if USE_PRIOR:
        kl_terms = []
        for i in range(1, NUM_STACKS):
            log_p = jnp.log(attentions[i - 1] + 1e-12)
            log_q = jnp.log(attentions[i] + 1e-12)
            kl = attentions[i - 1] * (log_p - log_q)
            kl = jnp.sum(kl, axis=-1)
            kl_terms.append(jnp.mean(kl))
        reg = jnp.mean(jnp.stack(kl_terms))
        loss = loss + REG_COEF * reg
    return loss


@jax.jit
def gct_forward(data, prior_dense, params):
    B = data['dx_ints'].shape[0]
    # FeatureEmbedder: embedding gather is glue; the LayerNorm runs inside the fused kernel.
    dx_emb = params['dx_table'][data['dx_ints']]                       # (B, M, H)
    proc_emb = params['proc_table'][data['proc_ints']]                 # (B, M, H)
    visit_emb = jnp.broadcast_to(params['visit_table'][0][None, None, :], (B, 1, HIDDEN))
    hidden = jnp.concatenate([visit_emb, dx_emb, proc_emb], axis=1)    # (B, S, H)

    masks = jnp.concatenate([jnp.ones((B, 1), jnp.float32),
                             data['dx_masks'], data['proc_masks']], axis=1)  # (B, S)
    guide, prior_guide = create_matrix_vdp(masks, prior_dense)
    del guide  # guide_mask is accepted but unused by SelfAttention (matches PyTorch)
    if prior_guide is None:
        prior_guide = jnp.zeros((B, NUM_CODES, NUM_CODES), jnp.float32)

    # get_extended_attention_mask: additive (1 - mask) * -10000 over the key axis.
    ext_mask = ((1.0 - masks) * -10000.0)[:, None, :]                  # (B, 1, S)

    hs, probs_wide, logits_pad = gct_fused_forward(
        hidden.reshape(B * NUM_CODES, HIDDEN), ext_mask, prior_guide, params)

    logits = logits_pad[:, :NUM_LABELS]                                # strip classifier padding
    probs = probs_wide[..., :NUM_CODES]                                # strip lane padding (zeros)
    all_hidden_states = tuple(hs[i].reshape(B, NUM_CODES, HIDDEN)
                              for i in range(NUM_STACKS + 1))
    all_attentions = tuple(probs[i][:, None, :, :] for i in range(NUM_STACKS))
    loss = get_loss(logits, data['labels'], all_attentions)
    return loss, logits, all_hidden_states, all_attentions


# ----------------------------- parameter init -----------------------------
def init_params(key):
    ks = iter(jax.random.split(key, 64))
    p = {}
    dx_table = 0.05 * jax.random.normal(next(ks), (VOCAB_DX + 1, HIDDEN), jnp.float32)
    p['dx_table'] = dx_table.at[VOCAB_DX].set(0.0)          # padding_idx row = 0
    proc_table = 0.05 * jax.random.normal(next(ks), (VOCAB_PROC + 1, HIDDEN), jnp.float32)
    p['proc_table'] = proc_table.at[VOCAB_PROC].set(0.0)
    p['visit_table'] = 0.05 * jax.random.normal(next(ks), (1, HIDDEN), jnp.float32)

    # Per-layer weights packed along leading axes so the whole stack is a
    # single operand (one prologue DMA) and stays VMEM-resident.
    sw, sb = [], []
    for _ in range(NUM_STACKS):
        sw.append(jnp.stack([0.05 * jax.random.normal(next(ks), (HIDDEN, HIDDEN), jnp.float32)
                             for _ in range(4)]))                       # [Wq, Wk, Wv, Wd]
        biases = [0.01 * jax.random.normal(next(ks), (1, HIDDEN), jnp.float32)
                  for _ in range(4)]                                     # [bq, bk, bv, bd]
        biases.append(jnp.ones((1, HIDDEN), jnp.float32))                # ln gamma
        biases.append(jnp.zeros((1, HIDDEN), jnp.float32))               # ln beta
        sb.append(jnp.stack(biases))
    p['stack_w'] = jnp.stack(sw)                             # (NUM_STACKS, 4, H, H)
    p['stack_b'] = jnp.stack(sb)                             # (NUM_STACKS, 6, 1, H)

    # Head params: [pooler W, classifier W (zero-padded to H cols)].
    wp = 0.05 * jax.random.normal(next(ks), (HIDDEN, HIDDEN), jnp.float32)
    wc = 0.05 * jax.random.normal(next(ks), (HIDDEN, NUM_LABELS), jnp.float32)
    wc_pad = jnp.zeros((HIDDEN, HIDDEN), jnp.float32).at[:, :NUM_LABELS].set(wc)
    p['head_w'] = jnp.stack([wp, wc_pad])                    # (2, H, H)

    emb_g = jnp.ones((1, HIDDEN), jnp.float32)
    emb_b = jnp.zeros((1, HIDDEN), jnp.float32)
    bp = 0.01 * jax.random.normal(next(ks), (1, HIDDEN), jnp.float32)
    bc = 0.01 * jax.random.normal(next(ks), (1, NUM_LABELS), jnp.float32)
    bc_pad = jnp.zeros((1, HIDDEN), jnp.float32).at[:, :NUM_LABELS].set(bc)
    p['head_b'] = jnp.stack([emb_g, emb_b, bp, bc_pad])      # (4, 1, H)
    return p


# ----------------------------- main -----------------------------
if __name__ == "__main__":
    key = jax.random.PRNGKey(0)
    k_param, k_dx, k_proc, k_len1, k_len2, k_lab, k_pi, k_pv = jax.random.split(key, 8)

    params = init_params(k_param)

    # synthetic input features (deterministic)
    dx_len = jax.random.randint(k_len1, (BATCH,), 1, MAX_NUM_CODES + 1)
    proc_len = jax.random.randint(k_len2, (BATCH,), 1, MAX_NUM_CODES + 1)
    ar = jnp.arange(MAX_NUM_CODES)
    dx_masks = (ar[None, :] < dx_len[:, None]).astype(jnp.float32)     # (B, M)
    proc_masks = (ar[None, :] < proc_len[:, None]).astype(jnp.float32)
    dx_ids = jax.random.randint(k_dx, (BATCH, MAX_NUM_CODES), 0, VOCAB_DX)
    proc_ids = jax.random.randint(k_proc, (BATCH, MAX_NUM_CODES), 0, VOCAB_PROC)
    dx_ints = jnp.where(dx_masks > 0, dx_ids, VOCAB_DX)                # pad idx = vocab size
    proc_ints = jnp.where(proc_masks > 0, proc_ids, VOCAB_PROC)
    labels = jax.random.randint(k_lab, (BATCH,), 0, NUM_LABELS)

    data = {'dx_ints': dx_ints, 'proc_ints': proc_ints,
            'dx_masks': dx_masks, 'proc_masks': proc_masks, 'labels': labels}

    # Dense equivalent of torch.sparse.FloatTensor(indices, values, size).to_dense()
    # (duplicate indices summed; sorting is irrelevant for the dense result).
    nnz = 24
    ki1, ki2, ki3 = jax.random.split(k_pi, 3)
    bi = jax.random.randint(ki1, (nnz,), 0, BATCH)
    ri = jax.random.randint(ki2, (nnz,), 0, 2 * MAX_NUM_CODES)
    ci = jax.random.randint(ki3, (nnz,), 0, 2 * MAX_NUM_CODES)
    vals = jax.random.uniform(k_pv, (nnz,), jnp.float32)
    prior_dense = jnp.zeros((BATCH, 2 * MAX_NUM_CODES, 2 * MAX_NUM_CODES),
                            jnp.float32).at[bi, ri, ci].add(vals)

    loss, logits, all_hidden, all_attn = gct_forward(data, prior_dense, params)
    jax.block_until_ready(loss)
    jax.block_until_ready(logits)
    assert logits.shape == (BATCH, NUM_LABELS)
    assert all_attn[0].shape == (BATCH, NUM_HEADS, NUM_CODES, NUM_CODES)
    assert all_hidden[0].shape == (BATCH, NUM_CODES, HIDDEN)
    assert len(all_hidden) == NUM_STACKS + 1
    assert bool(jnp.isfinite(loss))
    print("KERNEL_OK")
</pallas_src>

<mosaic_0001>
module attributes {stable_mosaic.version = 11 : i64} {
  func.func @gct_fused_kernel(%arg0: memref<34x32xf32, #tpu.memory_space<vmem>>, %arg1: memref<2x1x17xf32, #tpu.memory_space<vmem>>, %arg2: memref<2x17x17xf32, #tpu.memory_space<vmem>>, %arg3: memref<3x4x32x32xf32, #tpu.memory_space<vmem>>, %arg4: memref<3x6x1x32xf32, #tpu.memory_space<vmem>>, %arg5: memref<2x32x32xf32, #tpu.memory_space<vmem>>, %arg6: memref<4x1x32xf32, #tpu.memory_space<vmem>>, %arg7: memref<4x34x32xf32, #tpu.memory_space<vmem>>, %arg8: memref<3x2x17x128xf32, #tpu.memory_space<vmem>>, %arg9: memref<2x32xf32, #tpu.memory_space<vmem>>) attributes {dimension_semantics = [], scalar_prefetch = 0 : i64, scratch_operands = 0 : i64, tpu.core_type = #tpu.core_type<tc>} {
    %c0 = arith.constant 0 : index
    %c0_0 = arith.constant 0 : index
    %0 = vector.load %arg0[%c0, %c0_0] : memref<34x32xf32, #tpu.memory_space<vmem>>, vector<34x32xf32>
    %c0_1 = arith.constant 0 : index
    %c0_2 = arith.constant 0 : index
    %c0_3 = arith.constant 0 : index
    %1 = vector.load %arg6[%c0_1, %c0_2, %c0_3] : memref<4x1x32xf32, #tpu.memory_space<vmem>>, vector<1x1x32xf32>
    %2 = vector.shape_cast %1 : vector<1x1x32xf32> to vector<1x32xf32>
    %c1 = arith.constant 1 : index
    %c0_4 = arith.constant 0 : index
    %c0_5 = arith.constant 0 : index
    %3 = vector.load %arg6[%c1, %c0_4, %c0_5] : memref<4x1x32xf32, #tpu.memory_space<vmem>>, vector<1x1x32xf32>
    %4 = vector.shape_cast %3 : vector<1x1x32xf32> to vector<1x32xf32>
    %cst = arith.constant dense<0.000000e+00> : vector<34xf32>
    %5 = vector.multi_reduction <add>, %0, %cst [1] : vector<34x32xf32> to vector<34xf32>
    %6 = vector.shape_cast %5 : vector<34xf32> to vector<34x1xf32>
    %cst_6 = arith.constant 3.200000e+01 : f32
    %7 = vector.broadcast %cst_6 : f32 to vector<34x1xf32>
    %8 = arith.divf %6, %7 : vector<34x1xf32>
    %9 = vector.broadcast %8 : vector<34x1xf32> to vector<34x32xf32>
    %10 = arith.subf %0, %9 : vector<34x32xf32>
    %11 = arith.mulf %10, %10 : vector<34x32xf32>
    %cst_7 = arith.constant dense<0.000000e+00> : vector<34xf32>
    %12 = vector.multi_reduction <add>, %11, %cst_7 [1] : vector<34x32xf32> to vector<34xf32>
    %13 = vector.shape_cast %12 : vector<34xf32> to vector<34x1xf32>
    %cst_8 = arith.constant 3.200000e+01 : f32
    %14 = vector.broadcast %cst_8 : f32 to vector<34x1xf32>
    %15 = arith.divf %13, %14 : vector<34x1xf32>
    %16 = vector.broadcast %8 : vector<34x1xf32> to vector<34x32xf32>
    %17 = arith.subf %0, %16 : vector<34x32xf32>
    %cst_9 = arith.constant 9.99999974E-6 : f32
    %18 = vector.broadcast %cst_9 : f32 to vector<34x1xf32>
    %19 = arith.addf %15, %18 : vector<34x1xf32>
    %20 = math.rsqrt %19 : vector<34x1xf32>
    %21 = vector.broadcast %20 : vector<34x1xf32> to vector<34x32xf32>
    %22 = arith.mulf %17, %21 : vector<34x32xf32>
    %23 = vector.broadcast %2 : vector<1x32xf32> to vector<34x32xf32>
    %24 = arith.mulf %22, %23 : vector<34x32xf32>
    %25 = vector.broadcast %4 : vector<1x32xf32> to vector<34x32xf32>
    %26 = arith.addf %24, %25 : vector<34x32xf32>
    %c0_10 = arith.constant 0 : index
    %c0_11 = arith.constant 0 : index
    %c0_12 = arith.constant 0 : index
    %27 = vector.load %arg7[%c0_10, %c0_11, %c0_12] : memref<4x34x32xf32, #tpu.memory_space<vmem>>, vector<1x34x32xf32>
    %28 = vector.shape_cast %27 : vector<1x34x32xf32> to vector<34x32xf32>
    %29 = vector.shape_cast %26 : vector<34x32xf32> to vector<1x34x32xf32>
    tpu.vector_store %arg7[%c0_10, %c0_11, %c0_12], %29 {strides = array<i32>} : memref<4x34x32xf32, #tpu.memory_space<vmem>>, vector<1x34x32xf32>,
    %cst_13 = arith.constant 0.000000e+00 : f32
    %30 = vector.broadcast %cst_13 : f32 to vector<17x111xf32>
    %c0_14 = arith.constant 0 : index
    %c2 = arith.constant 2 : index
    %c0_15 = arith.constant 0 : index
    %c0_16 = arith.constant 0 : index
    %31 = vector.load %arg3[%c0_14, %c2, %c0_15, %c0_16] : memref<3x4x32x32xf32, #tpu.memory_space<vmem>>, vector<1x1x32x32xf32>
    %32 = vector.shape_cast %31 : vector<1x1x32x32xf32> to vector<32x32xf32>
    %c0_17 = arith.constant 0 : index
    %c3 = arith.constant 3 : index
    %c0_18 = arith.constant 0 : index
    %c0_19 = arith.constant 0 : index
    %33 = vector.load %arg3[%c0_17, %c3, %c0_18, %c0_19] : memref<3x4x32x32xf32, #tpu.memory_space<vmem>>, vector<1x1x32x32xf32>
    %34 = vector.shape_cast %33 : vector<1x1x32x32xf32> to vector<32x32xf32>
    %c0_20 = arith.constant 0 : index
    %c2_21 = arith.constant 2 : index
    %c0_22 = arith.constant 0 : index
    %c0_23 = arith.constant 0 : index
    %35 = vector.load %arg4[%c0_20, %c2_21, %c0_22, %c0_23] : memref<3x6x1x32xf32, #tpu.memory_space<vmem>>, vector<1x1x1x32xf32>
    %36 = vector.shape_cast %35 : vector<1x1x1x32xf32> to vector<1x32xf32>
    %c0_24 = arith.constant 0 : index
    %c3_25 = arith.constant 3 : index
    %c0_26 = arith.constant 0 : index
    %c0_27 = arith.constant 0 : index
    %37 = vector.load %arg4[%c0_24, %c3_25, %c0_26, %c0_27] : memref<3x6x1x32xf32, #tpu.memory_space<vmem>>, vector<1x1x1x32xf32>
    %38 = vector.shape_cast %37 : vector<1x1x1x32xf32> to vector<1x32xf32>
    %c0_28 = arith.constant 0 : index
    %c4 = arith.constant 4 : index
    %c0_29 = arith.constant 0 : index
    %c0_30 = arith.constant 0 : index
    %39 = vector.load %arg4[%c0_28, %c4, %c0_29, %c0_30] : memref<3x6x1x32xf32, #tpu.memory_space<vmem>>, vector<1x1x1x32xf32>
    %40 = vector.shape_cast %39 : vector<1x1x1x32xf32> to vector<1x32xf32>
    %c0_31 = arith.constant 0 : index
    %c5 = arith.constant 5 : index
    %c0_32 = arith.constant 0 : index
    %c0_33 = arith.constant 0 : index
    %41 = vector.load %arg4[%c0_31, %c5, %c0_32, %c0_33] : memref<3x6x1x32xf32, #tpu.memory_space<vmem>>, vector<1x1x1x32xf32>
    %42 = vector.shape_cast %41 : vector<1x1x1x32xf32> to vector<1x32xf32>
    %cst_34 = arith.constant dense<0.000000e+00> : vector<34x32xf32>
    %43 = tpu.matmul %26, %32, %cst_34 {dimension_numbers = #tpu.dot_dimension_numbers<[1], [0], [0], [1], [0, 0, 1, 1], [], []>} : vector<34x32xf32>, vector<32x32xf32>, vector<34x32xf32> -> vector<34x32xf32>
    %44 = vector.broadcast %36 : vector<1x32xf32> to vector<34x32xf32>
    %45 = arith.addf %43, %44 : vector<34x32xf32>
    %46 = vector.extract_strided_slice %45 {offsets = [0, 0], sizes = [17, 32], strides = [1, 1]} : vector<34x32xf32> to vector<17x32xf32>
    %c0_35 = arith.constant 0 : index
    %c0_36 = arith.constant 0 : index
    %c0_37 = arith.constant 0 : index
    %47 = vector.load %arg2[%c0_35, %c0_36, %c0_37] : memref<2x17x17xf32, #tpu.memory_space<vmem>>, vector<1x17x17xf32>
    %48 = vector.shape_cast %47 : vector<1x17x17xf32> to vector<17x17xf32>
    %49 = tpu.concatenate %48, %30 in 1 : vector<17x17xf32>, vector<17x111xf32> -> vector<17x128xf32>
    %c0_38 = arith.constant 0 : index
    %c0_39 = arith.constant 0 : index
    %c0_40 = arith.constant 0 : index
    %c0_41 = arith.constant 0 : index
    %50 = vector.load %arg8[%c0_38, %c0_39, %c0_40, %c0_41] : memref<3x2x17x128xf32, #tpu.memory_space<vmem>>, vector<1x1x17x128xf32>
    %51 = vector.shape_cast %50 : vector<1x1x17x128xf32> to vector<17x128xf32>
    %52 = vector.shape_cast %49 : vector<17x128xf32> to vector<1x1x17x128xf32>
    tpu.vector_store %arg8[%c0_38, %c0_39, %c0_40, %c0_41], %52 {strides = array<i32>} : memref<3x2x17x128xf32, #tpu.memory_space<vmem>>, vector<1x1x17x128xf32>,
    %cst_42 = arith.constant dense<0.000000e+00> : vector<17x32xf32>
    %53 = tpu.matmul %48, %46, %cst_42 {dimension_numbers = #tpu.dot_dimension_numbers<[1], [0], [0], [1], [0, 0, 1, 1], [], []>} : vector<17x17xf32>, vector<17x32xf32>, vector<17x32xf32> -> vector<17x32xf32>
    %54 = vector.extract_strided_slice %45 {offsets = [17, 0], sizes = [17, 32], strides = [1, 1]} : vector<34x32xf32> to vector<17x32xf32>
    %c1_43 = arith.constant 1 : index
    %c0_44 = arith.constant 0 : index
    %c0_45 = arith.constant 0 : index
    %55 = vector.load %arg2[%c1_43, %c0_44, %c0_45] : memref<2x17x17xf32, #tpu.memory_space<vmem>>, vector<1x17x17xf32>
    %56 = vector.shape_cast %55 : vector<1x17x17xf32> to vector<17x17xf32>
    %57 = tpu.concatenate %56, %30 in 1 : vector<17x17xf32>, vector<17x111xf32> -> vector<17x128xf32>
    %c0_46 = arith.constant 0 : index
    %c1_47 = arith.constant 1 : index
    %c0_48 = arith.constant 0 : index
    %c0_49 = arith.constant 0 : index
    %58 = vector.load %arg8[%c0_46, %c1_47, %c0_48, %c0_49] : memref<3x2x17x128xf32, #tpu.memory_space<vmem>>, vector<1x1x17x128xf32>
    %59 = vector.shape_cast %58 : vector<1x1x17x128xf32> to vector<17x128xf32>
    %60 = vector.shape_cast %57 : vector<17x128xf32> to vector<1x1x17x128xf32>
    tpu.vector_store %arg8[%c0_46, %c1_47, %c0_48, %c0_49], %60 {strides = array<i32>} : memref<3x2x17x128xf32, #tpu.memory_space<vmem>>, vector<1x1x17x128xf32>,
    %cst_50 = arith.constant dense<0.000000e+00> : vector<17x32xf32>
    %61 = tpu.matmul %56, %54, %cst_50 {dimension_numbers = #tpu.dot_dimension_numbers<[1], [0], [0], [1], [0, 0, 1, 1], [], []>} : vector<17x17xf32>, vector<17x32xf32>, vector<17x32xf32> -> vector<17x32xf32>
    %62 = tpu.concatenate %53, %61 in 0 : vector<17x32xf32>, vector<17x32xf32> -> vector<34x32xf32>
    %cst_51 = arith.constant dense<0.000000e+00> : vector<34x32xf32>
    %63 = tpu.matmul %62, %34, %cst_51 {dimension_numbers = #tpu.dot_dimension_numbers<[1], [0], [0], [1], [0, 0, 1, 1], [], []>} : vector<34x32xf32>, vector<32x32xf32>, vector<34x32xf32> -> vector<34x32xf32>
    %64 = vector.broadcast %38 : vector<1x32xf32> to vector<34x32xf32>
    %65 = arith.addf %63, %64 : vector<34x32xf32>
    %cst_52 = arith.constant 0.000000e+00 : f32
    %66 = vector.broadcast %cst_52 : f32 to vector<34x32xf32>
    %67 = arith.maximumf %65, %66 : vector<34x32xf32>
    %68 = arith.addf %67, %26 : vector<34x32xf32>
    %cst_53 = arith.constant dense<0.000000e+00> : vector<34xf32>
    %69 = vector.multi_reduction <add>, %68, %cst_53 [1] : vector<34x32xf32> to vector<34xf32>
    %70 = vector.shape_cast %69 : vector<34xf32> to vector<34x1xf32>
    %cst_54 = arith.constant 3.200000e+01 : f32
    %71 = vector.broadcast %cst_54 : f32 to vector<34x1xf32>
    %72 = arith.divf %70, %71 : vector<34x1xf32>
    %73 = vector.broadcast %72 : vector<34x1xf32> to vector<34x32xf32>
    %74 = arith.subf %68, %73 : vector<34x32xf32>
    %75 = arith.mulf %74, %74 : vector<34x32xf32>
    %cst_55 = arith.constant dense<0.000000e+00> : vector<34xf32>
    %76 = vector.multi_reduction <add>, %75, %cst_55 [1] : vector<34x32xf32> to vector<34xf32>
    %77 = vector.shape_cast %76 : vector<34xf32> to vector<34x1xf32>
    %cst_56 = arith.constant 3.200000e+01 : f32
    %78 = vector.broadcast %cst_56 : f32 to vector<34x1xf32>
    %79 = arith.divf %77, %78 : vector<34x1xf32>
    %80 = vector.broadcast %72 : vector<34x1xf32> to vector<34x32xf32>
    %81 = arith.subf %68, %80 : vector<34x32xf32>
    %cst_57 = arith.constant 9.99999974E-6 : f32
    %82 = vector.broadcast %cst_57 : f32 to vector<34x1xf32>
    %83 = arith.addf %79, %82 : vector<34x1xf32>
    %84 = math.rsqrt %83 : vector<34x1xf32>
    %85 = vector.broadcast %84 : vector<34x1xf32> to vector<34x32xf32>
    %86 = arith.mulf %81, %85 : vector<34x32xf32>
    %87 = vector.broadcast %40 : vector<1x32xf32> to vector<34x32xf32>
    %88 = arith.mulf %86, %87 : vector<34x32xf32>
    %89 = vector.broadcast %42 : vector<1x32xf32> to vector<34x32xf32>
    %90 = arith.addf %88, %89 : vector<34x32xf32>
    %c1_58 = arith.constant 1 : index
    %c0_59 = arith.constant 0 : index
    %c0_60 = arith.constant 0 : index
    %91 = vector.load %arg7[%c1_58, %c0_59, %c0_60] : memref<4x34x32xf32, #tpu.memory_space<vmem>>, vector<1x34x32xf32>
    %92 = vector.shape_cast %91 : vector<1x34x32xf32> to vector<34x32xf32>
    %93 = vector.shape_cast %90 : vector<34x32xf32> to vector<1x34x32xf32>
    tpu.vector_store %arg7[%c1_58, %c0_59, %c0_60], %93 {strides = array<i32>} : memref<4x34x32xf32, #tpu.memory_space<vmem>>, vector<1x34x32xf32>,
    %c1_61 = arith.constant 1 : index
    %c0_62 = arith.constant 0 : index
    %c0_63 = arith.constant 0 : index
    %c0_64 = arith.constant 0 : index
    %94 = vector.load %arg3[%c1_61, %c0_62, %c0_63, %c0_64] : memref<3x4x32x32xf32, #tpu.memory_space<vmem>>, vector<1x1x32x32xf32>
    %95 = vector.shape_cast %94 : vector<1x1x32x32xf32> to vector<32x32xf32>
    %c1_65 = arith.constant 1 : index
    %c1_66 = arith.constant 1 : index
    %c0_67 = arith.constant 0 : index
    %c0_68 = arith.constant 0 : index
    %96 = vector.load %arg3[%c1_65, %c1_66, %c0_67, %c0_68] : memref<3x4x32x32xf32, #tpu.memory_space<vmem>>, vector<1x1x32x32xf32>
    %97 = vector.shape_cast %96 : vector<1x1x32x32xf32> to vector<32x32xf32>
    %c1_69 = arith.constant 1 : index
    %c2_70 = arith.constant 2 : index
    %c0_71 = arith.constant 0 : index
    %c0_72 = arith.constant 0 : index
    %98 = vector.load %arg3[%c1_69, %c2_70, %c0_71, %c0_72] : memref<3x4x32x32xf32, #tpu.memory_space<vmem>>, vector<1x1x32x32xf32>
    %99 = vector.shape_cast %98 : vector<1x1x32x32xf32> to vector<32x32xf32>
    %c1_73 = arith.constant 1 : index
    %c3_74 = arith.constant 3 : index
    %c0_75 = arith.constant 0 : index
    %c0_76 = arith.constant 0 : index
    %100 = vector.load %arg3[%c1_73, %c3_74, %c0_75, %c0_76] : memref<3x4x32x32xf32, #tpu.memory_space<vmem>>, vector<1x1x32x32xf32>
    %101 = vector.shape_cast %100 : vector<1x1x32x32xf32> to vector<32x32xf32>
    %c1_77 = arith.constant 1 : index
    %c0_78 = arith.constant 0 : index
    %c0_79 = arith.constant 0 : index
    %c0_80 = arith.constant 0 : index
    %102 = vector.load %arg4[%c1_77, %c0_78, %c0_79, %c0_80] : memref<3x6x1x32xf32, #tpu.memory_space<vmem>>, vector<1x1x1x32xf32>
    %103 = vector.shape_cast %102 : vector<1x1x1x32xf32> to vector<1x32xf32>
    %c1_81 = arith.constant 1 : index
    %c1_82 = arith.constant 1 : index
    %c0_83 = arith.constant 0 : index
    %c0_84 = arith.constant 0 : index
    %104 = vector.load %arg4[%c1_81, %c1_82, %c0_83, %c0_84] : memref<3x6x1x32xf32, #tpu.memory_space<vmem>>, vector<1x1x1x32xf32>
    %105 = vector.shape_cast %104 : vector<1x1x1x32xf32> to vector<1x32xf32>
    %c1_85 = arith.constant 1 : index
    %c2_86 = arith.constant 2 : index
    %c0_87 = arith.constant 0 : index
    %c0_88 = arith.constant 0 : index
    %106 = vector.load %arg4[%c1_85, %c2_86, %c0_87, %c0_88] : memref<3x6x1x32xf32, #tpu.memory_space<vmem>>, vector<1x1x1x32xf32>
    %107 = vector.shape_cast %106 : vector<1x1x1x32xf32> to vector<1x32xf32>
    %c1_89 = arith.constant 1 : index
    %c3_90 = arith.constant 3 : index
    %c0_91 = arith.constant 0 : index
    %c0_92 = arith.constant 0 : index
    %108 = vector.load %arg4[%c1_89, %c3_90, %c0_91, %c0_92] : memref<3x6x1x32xf32, #tpu.memory_space<vmem>>, vector<1x1x1x32xf32>
    %109 = vector.shape_cast %108 : vector<1x1x1x32xf32> to vector<1x32xf32>
    %c1_93 = arith.constant 1 : index
    %c4_94 = arith.constant 4 : index
    %c0_95 = arith.constant 0 : index
    %c0_96 = arith.constant 0 : index
    %110 = vector.load %arg4[%c1_93, %c4_94, %c0_95, %c0_96] : memref<3x6x1x32xf32, #tpu.memory_space<vmem>>, vector<1x1x1x32xf32>
    %111 = vector.shape_cast %110 : vector<1x1x1x32xf32> to vector<1x32xf32>
    %c1_97 = arith.constant 1 : index
    %c5_98 = arith.constant 5 : index
    %c0_99 = arith.constant 0 : index
    %c0_100 = arith.constant 0 : index
    %112 = vector.load %arg4[%c1_97, %c5_98, %c0_99, %c0_100] : memref<3x6x1x32xf32, #tpu.memory_space<vmem>>, vector<1x1x1x32xf32>
    %113 = vector.shape_cast %112 : vector<1x1x1x32xf32> to vector<1x32xf32>
    %cst_101 = arith.constant dense<0.000000e+00> : vector<34x32xf32>
    %114 = tpu.matmul %90, %99, %cst_101 {dimension_numbers = #tpu.dot_dimension_numbers<[1], [0], [0], [1], [0, 0, 1, 1], [], []>} : vector<34x32xf32>, vector<32x32xf32>, vector<34x32xf32> -> vector<34x32xf32>
    %115 = vector.broadcast %107 : vector<1x32xf32> to vector<34x32xf32>
    %116 = arith.addf %114, %115 : vector<34x32xf32>
    %cst_102 = arith.constant dense<0.000000e+00> : vector<34x32xf32>
    %117 = tpu.matmul %90, %95, %cst_102 {dimension_numbers = #tpu.dot_dimension_numbers<[1], [0], [0], [1], [0, 0, 1, 1], [], []>} : vector<34x32xf32>, vector<32x32xf32>, vector<34x32xf32> -> vector<34x32xf32>
    %118 = vector.broadcast %103 : vector<1x32xf32> to vector<34x32xf32>
    %119 = arith.addf %117, %118 : vector<34x32xf32>
    %cst_103 = arith.constant dense<0.000000e+00> : vector<34x32xf32>
    %120 = tpu.matmul %90, %97, %cst_103 {dimension_numbers = #tpu.dot_dimension_numbers<[1], [0], [0], [1], [0, 0, 1, 1], [], []>} : vector<34x32xf32>, vector<32x32xf32>, vector<34x32xf32> -> vector<34x32xf32>
    %121 = vector.broadcast %105 : vector<1x32xf32> to vector<34x32xf32>
    %122 = arith.addf %120, %121 : vector<34x32xf32>
    %123 = vector.extract_strided_slice %116 {offsets = [0, 0], sizes = [17, 32], strides = [1, 1]} : vector<34x32xf32> to vector<17x32xf32>
    %124 = vector.extract_strided_slice %119 {offsets = [0, 0], sizes = [17, 32], strides = [1, 1]} : vector<34x32xf32> to vector<17x32xf32>
    %125 = vector.extract_strided_slice %122 {offsets = [0, 0], sizes = [17, 32], strides = [1, 1]} : vector<34x32xf32> to vector<17x32xf32>
    %cst_104 = arith.constant dense<0.000000e+00> : vector<17x17xf32>
    %126 = tpu.matmul %124, %125, %cst_104 {dimension_numbers = #tpu.dot_dimension_numbers<[1], [1], [0], [0], [0, 0, 1, 0], [], []>} : vector<17x32xf32>, vector<17x32xf32>, vector<17x17xf32> -> vector<17x17xf32>
    %cst_105 = arith.constant 0.176776692 : f32
    %127 = vector.broadcast %cst_105 : f32 to vector<17x17xf32>
    %128 = arith.mulf %126, %127 : vector<17x17xf32>
    %c0_106 = arith.constant 0 : index
    %c0_107 = arith.constant 0 : index
    %c0_108 = arith.constant 0 : index
    %129 = vector.load %arg1[%c0_106, %c0_107, %c0_108] : memref<2x1x17xf32, #tpu.memory_space<vmem>>, vector<1x1x17xf32>
    %130 = vector.shape_cast %129 : vector<1x1x17xf32> to vector<1x17xf32>
    %131 = vector.broadcast %130 : vector<1x17xf32> to vector<17x17xf32>
    %132 = arith.addf %128, %131 : vector<17x17xf32>
    %cst_109 = arith.constant dense<0xFF800000> : vector<17xf32>
    %133 = vector.multi_reduction <maximumf>, %132, %cst_109 [1] : vector<17x17xf32> to vector<17xf32>
    %134 = vector.shape_cast %133 : vector<17xf32> to vector<17x1xf32>
    %135 = vector.broadcast %134 : vector<17x1xf32> to vector<17x17xf32>
    %136 = arith.subf %132, %135 : vector<17x17xf32>
    %137 = math.exp %136 : vector<17x17xf32>
    %cst_110 = arith.constant dense<0.000000e+00> : vector<17xf32>
    %138 = vector.multi_reduction <add>, %137, %cst_110 [1] : vector<17x17xf32> to vector<17xf32>
    %139 = vector.shape_cast %138 : vector<17xf32> to vector<17x1xf32>
    %140 = tpu.reciprocal %139 : vector<17x1xf32> -> vector<17x1xf32>
    %141 = vector.broadcast %140 : vector<17x1xf32> to vector<17x17xf32>
    %142 = arith.mulf %137, %141 : vector<17x17xf32>
    %143 = tpu.concatenate %142, %30 in 1 : vector<17x17xf32>, vector<17x111xf32> -> vector<17x128xf32>
    %c1_111 = arith.constant 1 : index
    %c0_112 = arith.constant 0 : index
    %c0_113 = arith.constant 0 : index
    %c0_114 = arith.constant 0 : index
    %144 = vector.load %arg8[%c1_111, %c0_112, %c0_113, %c0_114] : memref<3x2x17x128xf32, #tpu.memory_space<vmem>>, vector<1x1x17x128xf32>
    %145 = vector.shape_cast %144 : vector<1x1x17x128xf32> to vector<17x128xf32>
    %146 = vector.shape_cast %143 : vector<17x128xf32> to vector<1x1x17x128xf32>
    tpu.vector_store %arg8[%c1_111, %c0_112, %c0_113, %c0_114], %146 {strides = array<i32>} : memref<3x2x17x128xf32, #tpu.memory_space<vmem>>, vector<1x1x17x128xf32>,
    %cst_115 = arith.constant dense<0.000000e+00> : vector<17x32xf32>
    %147 = tpu.matmul %142, %123, %cst_115 {dimension_numbers = #tpu.dot_dimension_numbers<[1], [0], [0], [1], [0, 0, 1, 1], [], []>} : vector<17x17xf32>, vector<17x32xf32>, vector<17x32xf32> -> vector<17x32xf32>
    %148 = vector.extract_strided_slice %116 {offsets = [17, 0], sizes = [17, 32], strides = [1, 1]} : vector<34x32xf32> to vector<17x32xf32>
    %149 = vector.extract_strided_slice %119 {offsets = [17, 0], sizes = [17, 32], strides = [1, 1]} : vector<34x32xf32> to vector<17x32xf32>
    %150 = vector.extract_strided_slice %122 {offsets = [17, 0], sizes = [17, 32], strides = [1, 1]} : vector<34x32xf32> to vector<17x32xf32>
    %cst_116 = arith.constant dense<0.000000e+00> : vector<17x17xf32>
    %151 = tpu.matmul %149, %150, %cst_116 {dimension_numbers = #tpu.dot_dimension_numbers<[1], [1], [0], [0], [0, 0, 1, 0], [], []>} : vector<17x32xf32>, vector<17x32xf32>, vector<17x17xf32> -> vector<17x17xf32>
    %cst_117 = arith.constant 0.176776692 : f32
    %152 = vector.broadcast %cst_117 : f32 to vector<17x17xf32>
    %153 = arith.mulf %151, %152 : vector<17x17xf32>
    %c1_118 = arith.constant 1 : index
    %c0_119 = arith.constant 0 : index
    %c0_120 = arith.constant 0 : index
    %154 = vector.load %arg1[%c1_118, %c0_119, %c0_120] : memref<2x1x17xf32, #tpu.memory_space<vmem>>, vector<1x1x17xf32>
    %155 = vector.shape_cast %154 : vector<1x1x17xf32> to vector<1x17xf32>
    %156 = vector.broadcast %155 : vector<1x17xf32> to vector<17x17xf32>
    %157 = arith.addf %153, %156 : vector<17x17xf32>
    %cst_121 = arith.constant dense<0xFF800000> : vector<17xf32>
    %158 = vector.multi_reduction <maximumf>, %157, %cst_121 [1] : vector<17x17xf32> to vector<17xf32>
    %159 = vector.shape_cast %158 : vector<17xf32> to vector<17x1xf32>
    %160 = vector.broadcast %159 : vector<17x1xf32> to vector<17x17xf32>
    %161 = arith.subf %157, %160 : vector<17x17xf32>
    %162 = math.exp %161 : vector<17x17xf32>
    %cst_122 = arith.constant dense<0.000000e+00> : vector<17xf32>
    %163 = vector.multi_reduction <add>, %162, %cst_122 [1] : vector<17x17xf32> to vector<17xf32>
    %164 = vector.shape_cast %163 : vector<17xf32> to vector<17x1xf32>
    %165 = tpu.reciprocal %164 : vector<17x1xf32> -> vector<17x1xf32>
    %166 = vector.broadcast %165 : vector<17x1xf32> to vector<17x17xf32>
    %167 = arith.mulf %162, %166 : vector<17x17xf32>
    %168 = tpu.concatenate %167, %30 in 1 : vector<17x17xf32>, vector<17x111xf32> -> vector<17x128xf32>
    %c1_123 = arith.constant 1 : index
    %c1_124 = arith.constant 1 : index
    %c0_125 = arith.constant 0 : index
    %c0_126 = arith.constant 0 : index
    %169 = vector.load %arg8[%c1_123, %c1_124, %c0_125, %c0_126] : memref<3x2x17x128xf32, #tpu.memory_space<vmem>>, vector<1x1x17x128xf32>
    %170 = vector.shape_cast %169 : vector<1x1x17x128xf32> to vector<17x128xf32>
    %171 = vector.shape_cast %168 : vector<17x128xf32> to vector<1x1x17x128xf32>
    tpu.vector_store %arg8[%c1_123, %c1_124, %c0_125, %c0_126], %171 {strides = array<i32>} : memref<3x2x17x128xf32, #tpu.memory_space<vmem>>, vector<1x1x17x128xf32>,
    %cst_127 = arith.constant dense<0.000000e+00> : vector<17x32xf32>
    %172 = tpu.matmul %167, %148, %cst_127 {dimension_numbers = #tpu.dot_dimension_numbers<[1], [0], [0], [1], [0, 0, 1, 1], [], []>} : vector<17x17xf32>, vector<17x32xf32>, vector<17x32xf32> -> vector<17x32xf32>
    %173 = tpu.concatenate %147, %172 in 0 : vector<17x32xf32>, vector<17x32xf32> -> vector<34x32xf32>
    %cst_128 = arith.constant dense<0.000000e+00> : vector<34x32xf32>
    %174 = tpu.matmul %173, %101, %cst_128 {dimension_numbers = #tpu.dot_dimension_numbers<[1], [0], [0], [1], [0, 0, 1, 1], [], []>} : vector<34x32xf32>, vector<32x32xf32>, vector<34x32xf32> -> vector<34x32xf32>
    %175 = vector.broadcast %109 : vector<1x32xf32> to vector<34x32xf32>
    %176 = arith.addf %174, %175 : vector<34x32xf32>
    %cst_129 = arith.constant 0.000000e+00 : f32
    %177 = vector.broadcast %cst_129 : f32 to vector<34x32xf32>
    %178 = arith.maximumf %176, %177 : vector<34x32xf32>
    %179 = arith.addf %178, %90 : vector<34x32xf32>
    %cst_130 = arith.constant dense<0.000000e+00> : vector<34xf32>
    %180 = vector.multi_reduction <add>, %179, %cst_130 [1] : vector<34x32xf32> to vector<34xf32>
    %181 = vector.shape_cast %180 : vector<34xf32> to vector<34x1xf32>
    %cst_131 = arith.constant 3.200000e+01 : f32
    %182 = vector.broadcast %cst_131 : f32 to vector<34x1xf32>
    %183 = arith.divf %181, %182 : vector<34x1xf32>
    %184 = vector.broadcast %183 : vector<34x1xf32> to vector<34x32xf32>
    %185 = arith.subf %179, %184 : vector<34x32xf32>
    %186 = arith.mulf %185, %185 : vector<34x32xf32>
    %cst_132 = arith.constant dense<0.000000e+00> : vector<34xf32>
    %187 = vector.multi_reduction <add>, %186, %cst_132 [1] : vector<34x32xf32> to vector<34xf32>
    %188 = vector.shape_cast %187 : vector<34xf32> to vector<34x1xf32>
    %cst_133 = arith.constant 3.200000e+01 : f32
    %189 = vector.broadcast %cst_133 : f32 to vector<34x1xf32>
    %190 = arith.divf %188, %189 : vector<34x1xf32>
    %191 = vector.broadcast %183 : vector<34x1xf32> to vector<34x32xf32>
    %192 = arith.subf %179, %191 : vector<34x32xf32>
    %cst_134 = arith.constant 9.99999974E-6 : f32
    %193 = vector.broadcast %cst_134 : f32 to vector<34x1xf32>
    %194 = arith.addf %190, %193 : vector<34x1xf32>
    %195 = math.rsqrt %194 : vector<34x1xf32>
    %196 = vector.broadcast %195 : vector<34x1xf32> to vector<34x32xf32>
    %197 = arith.mulf %192, %196 : vector<34x32xf32>
    %198 = vector.broadcast %111 : vector<1x32xf32> to vector<34x32xf32>
    %199 = arith.mulf %197, %198 : vector<34x32xf32>
    %200 = vector.broadcast %113 : vector<1x32xf32> to vector<34x32xf32>
    %201 = arith.addf %199, %200 : vector<34x32xf32>
    %c2_135 = arith.constant 2 : index
    %c0_136 = arith.constant 0 : index
    %c0_137 = arith.constant 0 : index
    %202 = vector.load %arg7[%c2_135, %c0_136, %c0_137] : memref<4x34x32xf32, #tpu.memory_space<vmem>>, vector<1x34x32xf32>
    %203 = vector.shape_cast %202 : vector<1x34x32xf32> to vector<34x32xf32>
    %204 = vector.shape_cast %201 : vector<34x32xf32> to vector<1x34x32xf32>
    tpu.vector_store %arg7[%c2_135, %c0_136, %c0_137], %204 {strides = array<i32>} : memref<4x34x32xf32, #tpu.memory_space<vmem>>, vector<1x34x32xf32>,
    %c2_138 = arith.constant 2 : index
    %c0_139 = arith.constant 0 : index
    %c0_140 = arith.constant 0 : index
    %c0_141 = arith.constant 0 : index
    %205 = vector.load %arg3[%c2_138, %c0_139, %c0_140, %c0_141] : memref<3x4x32x32xf32, #tpu.memory_space<vmem>>, vector<1x1x32x32xf32>
    %206 = vector.shape_cast %205 : vector<1x1x32x32xf32> to vector<32x32xf32>
    %c2_142 = arith.constant 2 : index
    %c1_143 = arith.constant 1 : index
    %c0_144 = arith.constant 0 : index
    %c0_145 = arith.constant 0 : index
    %207 = vector.load %arg3[%c2_142, %c1_143, %c0_144, %c0_145] : memref<3x4x32x32xf32, #tpu.memory_space<vmem>>, vector<1x1x32x32xf32>
    %208 = vector.shape_cast %207 : vector<1x1x32x32xf32> to vector<32x32xf32>
    %c2_146 = arith.constant 2 : index
    %c2_147 = arith.constant 2 : index
    %c0_148 = arith.constant 0 : index
    %c0_149 = arith.constant 0 : index
    %209 = vector.load %arg3[%c2_146, %c2_147, %c0_148, %c0_149] : memref<3x4x32x32xf32, #tpu.memory_space<vmem>>, vector<1x1x32x32xf32>
    %210 = vector.shape_cast %209 : vector<1x1x32x32xf32> to vector<32x32xf32>
    %c2_150 = arith.constant 2 : index
    %c3_151 = arith.constant 3 : index
    %c0_152 = arith.constant 0 : index
    %c0_153 = arith.constant 0 : index
    %211 = vector.load %arg3[%c2_150, %c3_151, %c0_152, %c0_153] : memref<3x4x32x32xf32, #tpu.memory_space<vmem>>, vector<1x1x32x32xf32>
    %212 = vector.shape_cast %211 : vector<1x1x32x32xf32> to vector<32x32xf32>
    %c2_154 = arith.constant 2 : index
    %c0_155 = arith.constant 0 : index
    %c0_156 = arith.constant 0 : index
    %c0_157 = arith.constant 0 : index
    %213 = vector.load %arg4[%c2_154, %c0_155, %c0_156, %c0_157] : memref<3x6x1x32xf32, #tpu.memory_space<vmem>>, vector<1x1x1x32xf32>
    %214 = vector.shape_cast %213 : vector<1x1x1x32xf32> to vector<1x32xf32>
    %c2_158 = arith.constant 2 : index
    %c1_159 = arith.constant 1 : index
    %c0_160 = arith.constant 0 : index
    %c0_161 = arith.constant 0 : index
    %215 = vector.load %arg4[%c2_158, %c1_159, %c0_160, %c0_161] : memref<3x6x1x32xf32, #tpu.memory_space<vmem>>, vector<1x1x1x32xf32>
    %216 = vector.shape_cast %215 : vector<1x1x1x32xf32> to vector<1x32xf32>
    %c2_162 = arith.constant 2 : index
    %c2_163 = arith.constant 2 : index
    %c0_164 = arith.constant 0 : index
    %c0_165 = arith.constant 0 : index
    %217 = vector.load %arg4[%c2_162, %c2_163, %c0_164, %c0_165] : memref<3x6x1x32xf32, #tpu.memory_space<vmem>>, vector<1x1x1x32xf32>
    %218 = vector.shape_cast %217 : vector<1x1x1x32xf32> to vector<1x32xf32>
    %c2_166 = arith.constant 2 : index
    %c3_167 = arith.constant 3 : index
    %c0_168 = arith.constant 0 : index
    %c0_169 = arith.constant 0 : index
    %219 = vector.load %arg4[%c2_166, %c3_167, %c0_168, %c0_169] : memref<3x6x1x32xf32, #tpu.memory_space<vmem>>, vector<1x1x1x32xf32>
    %220 = vector.shape_cast %219 : vector<1x1x1x32xf32> to vector<1x32xf32>
    %c2_170 = arith.constant 2 : index
    %c4_171 = arith.constant 4 : index
    %c0_172 = arith.constant 0 : index
    %c0_173 = arith.constant 0 : index
    %221 = vector.load %arg4[%c2_170, %c4_171, %c0_172, %c0_173] : memref<3x6x1x32xf32, #tpu.memory_space<vmem>>, vector<1x1x1x32xf32>
    %222 = vector.shape_cast %221 : vector<1x1x1x32xf32> to vector<1x32xf32>
    %c2_174 = arith.constant 2 : index
    %c5_175 = arith.constant 5 : index
    %c0_176 = arith.constant 0 : index
    %c0_177 = arith.constant 0 : index
    %223 = vector.load %arg4[%c2_174, %c5_175, %c0_176, %c0_177] : memref<3x6x1x32xf32, #tpu.memory_space<vmem>>, vector<1x1x1x32xf32>
    %224 = vector.shape_cast %223 : vector<1x1x1x32xf32> to vector<1x32xf32>
    %cst_178 = arith.constant dense<0.000000e+00> : vector<34x32xf32>
    %225 = tpu.matmul %201, %210, %cst_178 {dimension_numbers = #tpu.dot_dimension_numbers<[1], [0], [0], [1], [0, 0, 1, 1], [], []>} : vector<34x32xf32>, vector<32x32xf32>, vector<34x32xf32> -> vector<34x32xf32>
    %226 = vector.broadcast %218 : vector<1x32xf32> to vector<34x32xf32>
    %227 = arith.addf %225, %226 : vector<34x32xf32>
    %cst_179 = arith.constant dense<0.000000e+00> : vector<34x32xf32>
    %228 = tpu.matmul %201, %206, %cst_179 {dimension_numbers = #tpu.dot_dimension_numbers<[1], [0], [0], [1], [0, 0, 1, 1], [], []>} : vector<34x32xf32>, vector<32x32xf32>, vector<34x32xf32> -> vector<34x32xf32>
    %229 = vector.broadcast %214 : vector<1x32xf32> to vector<34x32xf32>
    %230 = arith.addf %228, %229 : vector<34x32xf32>
    %cst_180 = arith.constant dense<0.000000e+00> : vector<34x32xf32>
    %231 = tpu.matmul %201, %208, %cst_180 {dimension_numbers = #tpu.dot_dimension_numbers<[1], [0], [0], [1], [0, 0, 1, 1], [], []>} : vector<34x32xf32>, vector<32x32xf32>, vector<34x32xf32> -> vector<34x32xf32>
    %232 = vector.broadcast %216 : vector<1x32xf32> to vector<34x32xf32>
    %233 = arith.addf %231, %232 : vector<34x32xf32>
    %234 = vector.extract_strided_slice %227 {offsets = [0, 0], sizes = [17, 32], strides = [1, 1]} : vector<34x32xf32> to vector<17x32xf32>
    %235 = vector.extract_strided_slice %230 {offsets = [0, 0], sizes = [17, 32], strides = [1, 1]} : vector<34x32xf32> to vector<17x32xf32>
    %236 = vector.extract_strided_slice %233 {offsets = [0, 0], sizes = [17, 32], strides = [1, 1]} : vector<34x32xf32> to vector<17x32xf32>
    %cst_181 = arith.constant dense<0.000000e+00> : vector<17x17xf32>
    %237 = tpu.matmul %235, %236, %cst_181 {dimension_numbers = #tpu.dot_dimension_numbers<[1], [1], [0], [0], [0, 0, 1, 0], [], []>} : vector<17x32xf32>, vector<17x32xf32>, vector<17x17xf32> -> vector<17x17xf32>
    %cst_182 = arith.constant 0.176776692 : f32
    %238 = vector.broadcast %cst_182 : f32 to vector<17x17xf32>
    %239 = arith.mulf %237, %238 : vector<17x17xf32>
    %c0_183 = arith.constant 0 : index
    %c0_184 = arith.constant 0 : index
    %c0_185 = arith.constant 0 : index
    %240 = vector.load %arg1[%c0_183, %c0_184, %c0_185] : memref<2x1x17xf32, #tpu.memory_space<vmem>>, vector<1x1x17xf32>
    %241 = vector.shape_cast %240 : vector<1x1x17xf32> to vector<1x17xf32>
    %242 = vector.broadcast %241 : vector<1x17xf32> to vector<17x17xf32>
    %243 = arith.addf %239, %242 : vector<17x17xf32>
    %cst_186 = arith.constant dense<0xFF800000> : vector<17xf32>
    %244 = vector.multi_reduction <maximumf>, %243, %cst_186 [1] : vector<17x17xf32> to vector<17xf32>
    %245 = vector.shape_cast %244 : vector<17xf32> to vector<17x1xf32>
    %246 = vector.broadcast %245 : vector<17x1xf32> to vector<17x17xf32>
    %247 = arith.subf %243, %246 : vector<17x17xf32>
    %248 = math.exp %247 : vector<17x17xf32>
    %cst_187 = arith.constant dense<0.000000e+00> : vector<17xf32>
    %249 = vector.multi_reduction <add>, %248, %cst_187 [1] : vector<17x17xf32> to vector<17xf32>
    %250 = vector.shape_cast %249 : vector<17xf32> to vector<17x1xf32>
    %251 = tpu.reciprocal %250 : vector<17x1xf32> -> vector<17x1xf32>
    %252 = vector.broadcast %251 : vector<17x1xf32> to vector<17x17xf32>
    %253 = arith.mulf %248, %252 : vector<17x17xf32>
    %254 = tpu.concatenate %253, %30 in 1 : vector<17x17xf32>, vector<17x111xf32> -> vector<17x128xf32>
    %c2_188 = arith.constant 2 : index
    %c0_189 = arith.constant 0 : index
    %c0_190 = arith.constant 0 : index
    %c0_191 = arith.constant 0 : index
    %255 = vector.load %arg8[%c2_188, %c0_189, %c0_190, %c0_191] : memref<3x2x17x128xf32, #tpu.memory_space<vmem>>, vector<1x1x17x128xf32>
    %256 = vector.shape_cast %255 : vector<1x1x17x128xf32> to vector<17x128xf32>
    %257 = vector.shape_cast %254 : vector<17x128xf32> to vector<1x1x17x128xf32>
    tpu.vector_store %arg8[%c2_188, %c0_189, %c0_190, %c0_191], %257 {strides = array<i32>} : memref<3x2x17x128xf32, #tpu.memory_space<vmem>>, vector<1x1x17x128xf32>,
    %cst_192 = arith.constant dense<0.000000e+00> : vector<17x32xf32>
    %258 = tpu.matmul %253, %234, %cst_192 {dimension_numbers = #tpu.dot_dimension_numbers<[1], [0], [0], [1], [0, 0, 1, 1], [], []>} : vector<17x17xf32>, vector<17x32xf32>, vector<17x32xf32> -> vector<17x32xf32>
    %259 = vector.extract_strided_slice %227 {offsets = [17, 0], sizes = [17, 32], strides = [1, 1]} : vector<34x32xf32> to vector<17x32xf32>
    %260 = vector.extract_strided_slice %230 {offsets = [17, 0], sizes = [17, 32], strides = [1, 1]} : vector<34x32xf32> to vector<17x32xf32>
    %261 = vector.extract_strided_slice %233 {offsets = [17, 0], sizes = [17, 32], strides = [1, 1]} : vector<34x32xf32> to vector<17x32xf32>
    %cst_193 = arith.constant dense<0.000000e+00> : vector<17x17xf32>
    %262 = tpu.matmul %260, %261, %cst_193 {dimension_numbers = #tpu.dot_dimension_numbers<[1], [1], [0], [0], [0, 0, 1, 0], [], []>} : vector<17x32xf32>, vector<17x32xf32>, vector<17x17xf32> -> vector<17x17xf32>
    %cst_194 = arith.constant 0.176776692 : f32
    %263 = vector.broadcast %cst_194 : f32 to vector<17x17xf32>
    %264 = arith.mulf %262, %263 : vector<17x17xf32>
    %c1_195 = arith.constant 1 : index
    %c0_196 = arith.constant 0 : index
    %c0_197 = arith.constant 0 : index
    %265 = vector.load %arg1[%c1_195, %c0_196, %c0_197] : memref<2x1x17xf32, #tpu.memory_space<vmem>>, vector<1x1x17xf32>
    %266 = vector.shape_cast %265 : vector<1x1x17xf32> to vector<1x17xf32>
    %267 = vector.broadcast %266 : vector<1x17xf32> to vector<17x17xf32>
    %268 = arith.addf %264, %267 : vector<17x17xf32>
    %cst_198 = arith.constant dense<0xFF800000> : vector<17xf32>
    %269 = vector.multi_reduction <maximumf>, %268, %cst_198 [1] : vector<17x17xf32> to vector<17xf32>
    %270 = vector.shape_cast %269 : vector<17xf32> to vector<17x1xf32>
    %271 = vector.broadcast %270 : vector<17x1xf32> to vector<17x17xf32>
    %272 = arith.subf %268, %271 : vector<17x17xf32>
    %273 = math.exp %272 : vector<17x17xf32>
    %cst_199 = arith.constant dense<0.000000e+00> : vector<17xf32>
    %274 = vector.multi_reduction <add>, %273, %cst_199 [1] : vector<17x17xf32> to vector<17xf32>
    %275 = vector.shape_cast %274 : vector<17xf32> to vector<17x1xf32>
    %276 = tpu.reciprocal %275 : vector<17x1xf32> -> vector<17x1xf32>
    %277 = vector.broadcast %276 : vector<17x1xf32> to vector<17x17xf32>
    %278 = arith.mulf %273, %277 : vector<17x17xf32>
    %279 = tpu.concatenate %278, %30 in 1 : vector<17x17xf32>, vector<17x111xf32> -> vector<17x128xf32>
    %c2_200 = arith.constant 2 : index
    %c1_201 = arith.constant 1 : index
    %c0_202 = arith.constant 0 : index
    %c0_203 = arith.constant 0 : index
    %280 = vector.load %arg8[%c2_200, %c1_201, %c0_202, %c0_203] : memref<3x2x17x128xf32, #tpu.memory_space<vmem>>, vector<1x1x17x128xf32>
    %281 = vector.shape_cast %280 : vector<1x1x17x128xf32> to vector<17x128xf32>
    %282 = vector.shape_cast %279 : vector<17x128xf32> to vector<1x1x17x128xf32>
    tpu.vector_store %arg8[%c2_200, %c1_201, %c0_202, %c0_203], %282 {strides = array<i32>} : memref<3x2x17x128xf32, #tpu.memory_space<vmem>>, vector<1x1x17x128xf32>,
    %cst_204 = arith.constant dense<0.000000e+00> : vector<17x32xf32>
    %283 = tpu.matmul %278, %259, %cst_204 {dimension_numbers = #tpu.dot_dimension_numbers<[1], [0], [0], [1], [0, 0, 1, 1], [], []>} : vector<17x17xf32>, vector<17x32xf32>, vector<17x32xf32> -> vector<17x32xf32>
    %284 = tpu.concatenate %258, %283 in 0 : vector<17x32xf32>, vector<17x32xf32> -> vector<34x32xf32>
    %cst_205 = arith.constant dense<0.000000e+00> : vector<34x32xf32>
    %285 = tpu.matmul %284, %212, %cst_205 {dimension_numbers = #tpu.dot_dimension_numbers<[1], [0], [0], [1], [0, 0, 1, 1], [], []>} : vector<34x32xf32>, vector<32x32xf32>, vector<34x32xf32> -> vector<34x32xf32>
    %286 = vector.broadcast %220 : vector<1x32xf32> to vector<34x32xf32>
    %287 = arith.addf %285, %286 : vector<34x32xf32>
    %cst_206 = arith.constant 0.000000e+00 : f32
    %288 = vector.broadcast %cst_206 : f32 to vector<34x32xf32>
    %289 = arith.maximumf %287, %288 : vector<34x32xf32>
    %290 = arith.addf %289, %201 : vector<34x32xf32>
    %cst_207 = arith.constant dense<0.000000e+00> : vector<34xf32>
    %291 = vector.multi_reduction <add>, %290, %cst_207 [1] : vector<34x32xf32> to vector<34xf32>
    %292 = vector.shape_cast %291 : vector<34xf32> to vector<34x1xf32>
    %cst_208 = arith.constant 3.200000e+01 : f32
    %293 = vector.broadcast %cst_208 : f32 to vector<34x1xf32>
    %294 = arith.divf %292, %293 : vector<34x1xf32>
    %295 = vector.broadcast %294 : vector<34x1xf32> to vector<34x32xf32>
    %296 = arith.subf %290, %295 : vector<34x32xf32>
    %297 = arith.mulf %296, %296 : vector<34x32xf32>
    %cst_209 = arith.constant dense<0.000000e+00> : vector<34xf32>
    %298 = vector.multi_reduction <add>, %297, %cst_209 [1] : vector<34x32xf32> to vector<34xf32>
    %299 = vector.shape_cast %298 : vector<34xf32> to vector<34x1xf32>
    %cst_210 = arith.constant 3.200000e+01 : f32
    %300 = vector.broadcast %cst_210 : f32 to vector<34x1xf32>
    %301 = arith.divf %299, %300 : vector<34x1xf32>
    %302 = vector.broadcast %294 : vector<34x1xf32> to vector<34x32xf32>
    %303 = arith.subf %290, %302 : vector<34x32xf32>
    %cst_211 = arith.constant 9.99999974E-6 : f32
    %304 = vector.broadcast %cst_211 : f32 to vector<34x1xf32>
    %305 = arith.addf %301, %304 : vector<34x1xf32>
    %306 = math.rsqrt %305 : vector<34x1xf32>
    %307 = vector.broadcast %306 : vector<34x1xf32> to vector<34x32xf32>
    %308 = arith.mulf %303, %307 : vector<34x32xf32>
    %309 = vector.broadcast %222 : vector<1x32xf32> to vector<34x32xf32>
    %310 = arith.mulf %308, %309 : vector<34x32xf32>
    %311 = vector.broadcast %224 : vector<1x32xf32> to vector<34x32xf32>
    %312 = arith.addf %310, %311 : vector<34x32xf32>
    %c3_212 = arith.constant 3 : index
    %c0_213 = arith.constant 0 : index
    %c0_214 = arith.constant 0 : index
    %313 = vector.load %arg7[%c3_212, %c0_213, %c0_214] : memref<4x34x32xf32, #tpu.memory_space<vmem>>, vector<1x34x32xf32>
    %314 = vector.shape_cast %313 : vector<1x34x32xf32> to vector<34x32xf32>
    %315 = vector.shape_cast %312 : vector<34x32xf32> to vector<1x34x32xf32>
    tpu.vector_store %arg7[%c3_212, %c0_213, %c0_214], %315 {strides = array<i32>} : memref<4x34x32xf32, #tpu.memory_space<vmem>>, vector<1x34x32xf32>,
    %316 = vector.extract_strided_slice %312 {offsets = [0, 0], sizes = [1, 32], strides = [1, 1]} : vector<34x32xf32> to vector<1x32xf32>
    %317 = vector.extract_strided_slice %312 {offsets = [17, 0], sizes = [1, 32], strides = [1, 1]} : vector<34x32xf32> to vector<1x32xf32>
    %318 = tpu.concatenate %316, %317 in 0 : vector<1x32xf32>, vector<1x32xf32> -> vector<2x32xf32>
    %c0_215 = arith.constant 0 : index
    %c0_216 = arith.constant 0 : index
    %c0_217 = arith.constant 0 : index
    %319 = vector.load %arg5[%c0_215, %c0_216, %c0_217] : memref<2x32x32xf32, #tpu.memory_space<vmem>>, vector<1x32x32xf32>
    %320 = vector.shape_cast %319 : vector<1x32x32xf32> to vector<32x32xf32>
    %cst_218 = arith.constant dense<0.000000e+00> : vector<2x32xf32>
    %321 = tpu.matmul %318, %320, %cst_218 {dimension_numbers = #tpu.dot_dimension_numbers<[1], [0], [0], [1], [0, 0, 1, 1], [], []>} : vector<2x32xf32>, vector<32x32xf32>, vector<2x32xf32> -> vector<2x32xf32>
    %c2_219 = arith.constant 2 : index
    %c0_220 = arith.constant 0 : index
    %c0_221 = arith.constant 0 : index
    %322 = vector.load %arg6[%c2_219, %c0_220, %c0_221] : memref<4x1x32xf32, #tpu.memory_space<vmem>>, vector<1x1x32xf32>
    %323 = vector.shape_cast %322 : vector<1x1x32xf32> to vector<1x32xf32>
    %324 = vector.broadcast %323 : vector<1x32xf32> to vector<2x32xf32>
    %325 = arith.addf %321, %324 : vector<2x32xf32>
    %cst_222 = arith.constant 0.000000e+00 : f32
    %326 = vector.broadcast %cst_222 : f32 to vector<2x32xf32>
    %327 = arith.maximumf %325, %326 : vector<2x32xf32>
    %c1_223 = arith.constant 1 : index
    %c0_224 = arith.constant 0 : index
    %c0_225 = arith.constant 0 : index
    %328 = vector.load %arg5[%c1_223, %c0_224, %c0_225] : memref<2x32x32xf32, #tpu.memory_space<vmem>>, vector<1x32x32xf32>
    %329 = vector.shape_cast %328 : vector<1x32x32xf32> to vector<32x32xf32>
    %cst_226 = arith.constant dense<0.000000e+00> : vector<2x32xf32>
    %330 = tpu.matmul %327, %329, %cst_226 {dimension_numbers = #tpu.dot_dimension_numbers<[1], [0], [0], [1], [0, 0, 1, 1], [], []>} : vector<2x32xf32>, vector<32x32xf32>, vector<2x32xf32> -> vector<2x32xf32>
    %c3_227 = arith.constant 3 : index
    %c0_228 = arith.constant 0 : index
    %c0_229 = arith.constant 0 : index
    %331 = vector.load %arg6[%c3_227, %c0_228, %c0_229] : memref<4x1x32xf32, #tpu.memory_space<vmem>>, vector<1x1x32xf32>
    %332 = vector.shape_cast %331 : vector<1x1x32xf32> to vector<1x32xf32>
    %333 = vector.broadcast %332 : vector<1x32xf32> to vector<2x32xf32>
    %334 = arith.addf %330, %333 : vector<2x32xf32>
    %c0_230 = arith.constant 0 : index
    %c0_231 = arith.constant 0 : index
    %335 = vector.load %arg9[%c0_230, %c0_231] : memref<2x32xf32, #tpu.memory_space<vmem>>, vector<2x32xf32>
    tpu.vector_store %arg9[%c0_230, %c0_231], %334 {strides = array<i32>} : memref<2x32xf32, #tpu.memory_space<vmem>>, vector<2x32xf32>,
    return
  }
}

</mosaic_0001>

<llo_original>
// kernel: squeeze.12
$region0: #{squeeze.12}
  %s0 = inlined_call_operand.vmem [shape: f32[1,34,32], index: 0, kind: input, shape index: {}]
  %s1 = inlined_call_operand.vmem [shape: f32[2,17,32], index: 1, kind: output, shape index: {}]
  %v2 = vld [vmem:[%s0] sm:$0xff]
  %vm3 = vcmask 261120
  %4 = vst.msk [vmem:[%s1] sm:$0xff] %vm3, %v2
  %s5 = scalar_lea.vmem %s0, 8
  %v6 = vld [vmem:[%s5] sm:$0xff]
  %vm7 = vcmask 261120
  %s8 = scalar_lea.vmem %s1, 8
  %9 = vst.msk [vmem:[%s8] sm:$0xff] %vm7, %v6
  %s10 = scalar_lea.vmem %s0, 16
  %v11 = vld [vmem:[%s10] sm:$0xff]
  %vm12 = vcmask 261120
  %s13 = scalar_lea.vmem %s1, 16
  %14 = vst.msk [vmem:[%s13] ss:$8 sm:$0x3] %vm12, %v11
  %s15 = scalar_lea.vmem %s1, 23
  %16 = vst.msk [vmem:[%s15] sm:$0xfc] %vm12, %v11
  %s17 = scalar_lea.vmem %s0, 24
  %v18 = vld [vmem:[%s17] sm:$0xff]
  %vm19 = vcmask 261120
  %s20 = scalar_lea.vmem %s1, 31
  %21 = vst.msk [vmem:[%s20] sm:$0xff] %vm19, %v18
  %s22 = scalar_lea.vmem %s0, 32
  %v23 = vld [vmem:[%s22] sm:$0x3]
  %vm24 = vcmask 261120
  %s25 = scalar_lea.vmem %s1, 39
  %26 = vst.msk [vmem:[%s25] sm:$0x3] %vm24, %v23

// kernel: gct_forward.1
$region0: #{gct_forward.1}
  #allocation0 [shape = 'u32[]', space=smem, size = 0x4, offset = 0x4, fixed_abs, tag = 'smem constant byte address 0x4 - core index']
  #allocation1 [shape = 'u32[72,128]{1,0:T(1,128)}', space=vmem, size = 0x9000, scoped, tag = 'internal scratch']
  %s0 = inlined_call_operand.vmem [shape: f32[34,32], index: 0, kind: input, shape index: {}]
  %s1 = inlined_call_operand.vmem [shape: f32[2,1,17], index: 1, kind: input, shape index: {}]
  %s2 = inlined_call_operand.vmem [shape: f32[2,17,17], index: 2, kind: input, shape index: {}]
  %s3 = inlined_call_operand.vmem [shape: f32[3,4,32,32], index: 3, kind: input, shape index: {}]
  %s4 = inlined_call_operand.vmem [shape: f32[3,6,1,32], index: 4, kind: input, shape index: {}]
  %s5 = inlined_call_operand.vmem [shape: f32[2,32,32], index: 5, kind: input, shape index: {}]
  %s6 = inlined_call_operand.vmem [shape: f32[4,1,32], index: 6, kind: input, shape index: {}]
  %s7 = inlined_call_operand.vmem [shape: f32[4,34,32], index: 7, kind: output, shape index: {0}]
  %s8 = inlined_call_operand.vmem [shape: f32[3,2,17,128], index: 8, kind: output, shape index: {1}]
  %s9 = inlined_call_operand.vmem [shape: f32[2,32], index: 9, kind: output, shape index: {2}]
  %10 = xla_tuple %s7, %s8, %s9
  %s11 = sld [smem:[#allocation0]]
  $region54: #{gct_forward.1} parent=0
    _
  %s13 = ssub.s32 1, %s11
  %s14 = scalar_select 0, %s13, %s11
  // Predicated region
  $region2: #{gct_forward.1} parent=0 // pred_check
    _
  $region3: #{gct_forward.1} parent=0 // pred_check_branch
    %16 = sbr.rel (0) target = $region5
  $region4: #{gct_forward.1} parent=0 // pred_region
    _
  $region5: #{gct_forward.1} parent=0 // pred_fallthru
    _
  // Predicated region
  $region6: #{gct_forward.1} parent=0 // pred_check
    _
  $region7: #{gct_forward.1} parent=0 // pred_check_branch
    %18 = sbr.rel (0) target = $region9
  $region8: #{gct_forward.1} parent=0 // pred_region
    _
  $region9: #{gct_forward.1} parent=0 // pred_fallthru
    _
  // Predicated region
  $region10: #{gct_forward.1} parent=0 // pred_check
    _
  $region11: #{gct_forward.1} parent=0 // pred_check_branch
    %20 = sbr.rel (0) target = $region13
  $region12: #{gct_forward.1} parent=0 // pred_region
    _
  $region13: #{gct_forward.1} parent=0 // pred_fallthru
    _
  // Predicated region
  $region14: #{gct_forward.1} parent=0 // pred_check
    _
  $region15: #{gct_forward.1} parent=0 // pred_check_branch
    %22 = sbr.rel (0) target = $region17
  $region16: #{gct_forward.1} parent=0 // pred_region
    _
  $region17: #{gct_forward.1} parent=0 // pred_fallthru
    _
  // Predicated region
  $region18: #{gct_forward.1} parent=0 // pred_check
    _
  $region19: #{gct_forward.1} parent=0 // pred_check_branch
    %24 = sbr.rel (0) target = $region21
  $region20: #{gct_forward.1} parent=0 // pred_region
    _
  $region21: #{gct_forward.1} parent=0 // pred_fallthru
    _
  // Predicated region
  $region22: #{gct_forward.1} parent=0 // pred_check
    _
  $region23: #{gct_forward.1} parent=0 // pred_check_branch
    %26 = sbr.rel (0) target = $region25
  $region24: #{gct_forward.1} parent=0 // pred_region
    _
  $region25: #{gct_forward.1} parent=0 // pred_fallthru
    _
  // Predicated region
  $region26: #{gct_forward.1} parent=0 // pred_check
    _
  $region27: #{gct_forward.1} parent=0 // pred_check_branch
    %28 = sbr.rel (0) target = $region29
  $region28: #{gct_forward.1} parent=0 // pred_region
    _
  $region29: #{gct_forward.1} parent=0 // pred_fallthru
    _
  %v29 = vld [vmem:[%s0] sm:$0xff]
  %v30 = vld [vmem:[%s0 + $0x8] sm:$0xff]
  %v31 = vld [vmem:[%s0 + $0x10] sm:$0xff]
  %v32 = vld [vmem:[%s0 + $0x18] sm:$0xff]
  %v33 = vld [vmem:[%s0 + $0x20] sm:$0x3]
  %v34 = vld [vmem:[%s6] sm:$0x1]
  %s35 = scalar_lea.vmem %s6, 1
  %v36 = vld [vmem:[%s35] sm:$0x1]
  %vm37 = vcmask 261120
  %v38 = vsel %vm37, %v29, 0.0
  %39 = vadd.xlane.f32.xlu0 %v38
  %v40 = vpop.xlane.xlu0 %39
  %v41 = vsel %vm37, %v30, 0.0
  %42 = vadd.xlane.f32.xlu0 %v41
  %v43 = vpop.xlane.xlu0 %42
  %v44 = vsel %vm37, %v31, 0.0
  %45 = vadd.xlane.f32.xlu0 %v44
  %v46 = vpop.xlane.xlu0 %45
  %v47 = vsel %vm37, %v32, 0.0
  %48 = vadd.xlane.f32.xlu0 %v47
  %v49 = vpop.xlane.xlu0 %48
  %vm50 = vcmask 254976
  %v51 = vsel %vm50, %v33, 0.0
  %52 = vadd.xlane.f32.xlu0 %v51
  %v53 = vpop.xlane.xlu0 %52
  %v54 = vrcp.pop 32.0
  %v55 = vmul.f32 32.0, %v54
  %v56 = vsub.f32 1.0, %v55
  %v57 = vmul.f32 %v54, %v56
  %v58 = vadd.f32 %v54, %v57
  %vm59 = vweird.f32 %v54
  %v60 = vsel %vm59, %v54, %v58
  %v61 = vmul.f32 %v40, %v60
  %v62 = vmul.f32 %v43, %v60
  %v63 = vmul.f32 %v46, %v60
  %v64 = vmul.f32 %v49, %v60
  %v65 = vmul.f32 %v53, %v60
  %v66 = vsub.f32 %v29, %v61
  %v67 = vsub.f32 %v30, %v62
  %v68 = vsub.f32 %v31, %v63
  %v69 = vsub.f32 %v32, %v64
  %v70 = vsub.f32 %v33, %v65
  %v71 = vmul.f32 %v66, %v66
  %v72 = vmul.f32 %v67, %v67
  %v73 = vmul.f32 %v68, %v68
  %v74 = vmul.f32 %v69, %v69
  %v75 = vmul.f32 %v70, %v70
  %v76 = vsel %vm37, %v71, 0.0
  %77 = vadd.xlane.f32.xlu0 %v76
  %v78 = vpop.xlane.xlu0 %77
  %v79 = vsel %vm37, %v72, 0.0
  %80 = vadd.xlane.f32.xlu0 %v79
  %v81 = vpop.xlane.xlu0 %80
  %v82 = vsel %vm37, %v73, 0.0
  %83 = vadd.xlane.f32.xlu0 %v82
  %v84 = vpop.xlane.xlu0 %83
  %v85 = vsel %vm37, %v74, 0.0
  %86 = vadd.xlane.f32.xlu0 %v85
  %v87 = vpop.xlane.xlu0 %86
  %v88 = vsel %vm50, %v75, 0.0
  %89 = vadd.xlane.f32.xlu0 %v88
  %v90 = vpop.xlane.xlu0 %89
  %v91 = vmul.f32 %v78, %v60
  %v92 = vmul.f32 %v81, %v60
  %v93 = vmul.f32 %v84, %v60
  %v94 = vmul.f32 %v87, %v60
  %v95 = vmul.f32 %v90, %v60
  %v96 = vadd.f32 %v91, 1e-05
  %v97 = vadd.f32 %v92, 1e-05
  %v98 = vadd.f32 %v93, 1e-05
  %v99 = vadd.f32 %v94, 1e-05
  %v100 = vadd.f32 %v95, 1e-05
  %v101 = vrsqrt.pop %v96
  %v102 = vmul.f32 %v101, %v96
  %v103 = vmul.f32 %v102, %v101
  %v104 = vmul.f32 0.5, %v103
  %v105 = vsub.f32 1.5, %v104
  %v106 = vmul.f32 %v101, %v105
  %vm107 = vweird.f32 %v96
  %vm108 = vweird.f32 %v101
  %vm109 = vmor %vm107, %vm108
  %v110 = vsel %vm109, %v101, %v106
  %v111 = vrsqrt.pop %v97
  %v112 = vmul.f32 %v111, %v97
  %v113 = vmul.f32 %v112, %v111
  %v114 = vmul.f32 0.5, %v113
  %v115 = vsub.f32 1.5, %v114
  %v116 = vmul.f32 %v111, %v115
  %vm117 = vweird.f32 %v97
  %vm118 = vweird.f32 %v111
  %vm119 = vmor %vm117, %vm118
  %v120 = vsel %vm119, %v111, %v116
  %v121 = vrsqrt.pop %v98
  %v122 = vmul.f32 %v121, %v98
  %v123 = vmul.f32 %v122, %v121
  %v124 = vmul.f32 0.5, %v123
  %v125 = vsub.f32 1.5, %v124
  %v126 = vmul.f32 %v121, %v125
  %vm127 = vweird.f32 %v98
  %vm128 = vweird.f32 %v121
  %vm129 = vmor %vm127, %vm128
  %v130 = vsel %vm129, %v121, %v126
  %v131 = vrsqrt.pop %v99
  %v132 = vmul.f32 %v131, %v99
  %v133 = vmul.f32 %v132, %v131
  %v134 = vmul.f32 0.5, %v133
  %v135 = vsub.f32 1.5, %v134
  %v136 = vmul.f32 %v131, %v135
  %vm137 = vweird.f32 %v99
  %vm138 = vweird.f32 %v131
  %vm139 = vmor %vm137, %vm138
  %v140 = vsel %vm139, %v131, %v136
  %v141 = vrsqrt.pop %v100
  %v142 = vmul.f32 %v141, %v100
  %v143 = vmul.f32 %v142, %v141
  %v144 = vmul.f32 0.5, %v143
  %v145 = vsub.f32 1.5, %v144
  %v146 = vmul.f32 %v141, %v145
  %vm147 = vweird.f32 %v100
  %vm148 = vweird.f32 %v141
  %vm149 = vmor %vm147, %vm148
  %v150 = vsel %vm149, %v141, %v146
  %v151 = vmul.f32 %v66, %v110
  %v152 = vmul.f32 %v67, %v120
  %v153 = vmul.f32 %v68, %v130
  %v154 = vmul.f32 %v69, %v140
  %v155 = vmul.f32 %v70, %v150
  %v157 = vperm.slane %v34, 0
  %v159 = vmul.f32 %v151, %v157
  %v160 = vmul.f32 %v152, %v157
  %v161 = vmul.f32 %v153, %v157
  %v162 = vmul.f32 %v154, %v157
  %v163 = vmul.f32 %v155, %v157
  %v165 = vperm.slane %v36, 0
  %v167 = vadd.f32 %v159, %v165
  %v168 = vadd.f32 %v160, %v165
  %v169 = vadd.f32 %v161, %v165
  %v170 = vadd.f32 %v162, %v165
  %v171 = vadd.f32 %v163, %v165
  %172 = vst.msk [vmem:[%s7] sm:$0xff] %vm37, %v167
  %173 = vst.msk [vmem:[%s7 + $0x8] sm:$0xff] %vm37, %v168
  %174 = vst.msk [vmem:[%s7 + $0x10] sm:$0xff] %vm37, %v169
  %175 = vst.msk [vmem:[%s7 + $0x18] sm:$0xff] %vm37, %v170
  %176 = vst.msk [vmem:[%s7 + $0x20] sm:$0x3] %vm50, %v171
  %s177 = scalar_lea.vmem %s3, 64
  %v178 = vld [vmem:[%s177] sm:$0xff]
  %v179 = vld [vmem:[%s177 + $0x8] sm:$0xff]
  %v180 = vld [vmem:[%s177 + $0x10] sm:$0xff]
  %v181 = vld [vmem:[%s177 + $0x18] sm:$0xff]
  %s182 = scalar_lea.vmem %s3, 96
  %v183 = vld [vmem:[%s182] sm:$0xff]
  %v184 = vld [vmem:[%s182 + $0x8] sm:$0xff]
  %v185 = vld [vmem:[%s182 + $0x10] sm:$0xff]
  %v186 = vld [vmem:[%s182 + $0x18] sm:$0xff]
  %s187 = scalar_lea.vmem %s4, 2
  %v188 = vld [vmem:[%s187] sm:$0x1]
  %s189 = scalar_lea.vmem %s4, 3
  %v190 = vld [vmem:[%s189] sm:$0x1]
  %s191 = scalar_lea.vmem %s4, 4
  %v192 = vld [vmem:[%s191] sm:$0x1]
  %s193 = scalar_lea.vmem %s4, 5
  %v194 = vld [vmem:[%s193] sm:$0x1]
  %v196 = vperm.slane %v188, 0
  %v199 = vsel %vm37, %v167, 0
  %v202 = vsel %vm37, %v168, 0
  %v205 = vsel %vm37, %v169, 0
  %v208 = vsel %vm37, %v170, 0
  %v211 = vsel %vm37, %v171, 0
  %213 = vmatpush.msra.mxu0 0.0
  %214 = vmatpush.msra.mxu0 0.0
  %215 = vmatpush.msra.mxu0 0.0
  %216 = vmatpush.msra.mxu0 0.0
  %217 = vmatpush.msra.mxu0 0.0
  %218 = vmatpush.msra.mxu0 0.0
  %219 = vmatpush.msra.mxu0 0.0
  %220 = vmatpush.msra.mxu0 0.0
  %221 = vmatpush.msra.mxu0 0.0
  %222 = vmatpush.msra.mxu0 0.0
  %223 = vmatpush.msra.mxu0 0.0
  %224 = vmatpush.msra.mxu0 0.0
  %225 = vmatpush.msra.mxu0 %v181
  %226 = vmatpush.msra.mxu0 %v180
  %227 = vmatpush.msra.mxu0 %v179
  %228 = vmatpush.msra.mxu0 %v178
  %229 = vmatmul.f32.gmra.mxu0 %v199
  %v230 = vpop.f32.mrf.mxu0
  %v231 = vadd.f32 %v196, %v230
  %232 = vmatmul.f32.gmra.mxu0 %v202
  %v233 = vpop.f32.mrf.mxu0
  %v234 = vadd.f32 %v196, %v233
  %235 = vmatmul.f32.gmra.mxu0 %v205
  %v236 = vpop.f32.mrf.mxu0
  %v237 = vadd.f32 %v196, %v236
  %238 = vmatmul.f32.gmra.mxu0 %v208
  %v239 = vpop.f32.mrf.mxu0
  %v240 = vadd.f32 %v196, %v239
  %241 = vmatmul.f32.gmra.mxu0 %v211
  %v242 = vpop.f32.mrf.mxu0
  %v243 = vadd.f32 %v196, %v242
  %244 = vdwg.mxu0
  %v245 = vld [vmem:[%s2] sm:$0xff]
  %v246 = vld [vmem:[%s2 + $0x8] sm:$0xff]
  %v247 = vld [vmem:[%s2 + $0x10] sm:$0x1]
  %vm248 = vcmask 138240
  %v249 = vsel %vm248, %v245, 0.0
  %v250 = vsel %vm248, %v246, 0.0
  %v251 = vsel %vm248, %v247, 0.0
  %252 = vst [vmem:[%s8] sm:$0xff] %v249
  %253 = vst [vmem:[%s8 + $0x8] sm:$0xff] %v250
  %254 = vst [vmem:[%s8 + $0x10] sm:$0x1] %v251
  %v256 = vsel %vm248, %v245, 0
  %v259 = vsel %vm248, %v246, 0
  %v262 = vsel %vm248, %v247, 0
  %vm264 = vcmask 1040384
  %v266 = vsel %vm264, %v237, 0
  %268 = vmatpush.msra.mxu0 0.0
  %269 = vmatpush.msra.mxu0 0.0
  %270 = vmatpush.msra.mxu0 0.0
  %271 = vmatpush.msra.mxu0 0.0
  %272 = vmatpush.msra.mxu0 0.0
  %273 = vmatpush.msra.mxu0 0.0
  %274 = vmatpush.msra.mxu0 0.0
  %275 = vmatpush.msra.mxu0 0.0
  %276 = vmatpush.msra.mxu0 0.0
  %277 = vmatpush.msra.mxu0 0.0
  %278 = vmatpush.msra.mxu0 0.0
  %279 = vmatpush.msra.mxu0 0.0
  %280 = vmatpush.msra.mxu0 0.0
  %281 = vmatpush.msra.mxu0 %v266
  %282 = vmatpush.msra.mxu0 %v234
  %283 = vmatpush.msra.mxu0 %v231
  %284 = vmatmul.f32.gmra.mxu0 %v256
  %v285 = vpop.f32.mrf.mxu0
  %v286 = vadd.f32 0.0, %v285
  %287 = vmatmul.f32.gmra.mxu0 %v259
  %v288 = vpop.f32.mrf.mxu0
  %v289 = vadd.f32 0.0, %v288
  %290 = vmatmul.f32.gmra.mxu0 %v262
  %v291 = vpop.f32.mrf.mxu0
  %v292 = vadd.f32 0.0, %v291
  %293 = vdwg.mxu0
  %s294 = scalar_lea.vmem %s2, 24
  %v295 = vld [vmem:[%s294] sm:$0xff]
  %v296 = vld [vmem:[%s294 + $0x8] sm:$0xff]
  %v297 = vld [vmem:[%s294 + $0x10] sm:$0x1]
  %v298 = vsel %vm248, %v295, 0.0
  %v299 = vsel %vm248, %v296, 0.0
  %v300 = vsel %vm248, %v297, 0.0
  %s301 = scalar_lea.vmem %s8, 24
  %302 = vst [vmem:[%s301] sm:$0xff] %v298
  %303 = vst [vmem:[%s301 + $0x8] sm:$0xff] %v299
  %304 = vst [vmem:[%s301 + $0x10] sm:$0x1] %v300
  %vm307 = vcmask 1046528
  %v308 = vrot.slane %v237, 1
  %v309 = vrot.slane %v240, 1
  %v310 = vsel %vm307, %v308, %v309
  %v311 = vrot.slane %v243, 1
  %v312 = vsel %vm307, %v309, %v311
  %v316 = vsel %vm248, %v295, 0
  %v319 = vsel %vm248, %v296, 0
  %v322 = vsel %vm248, %v297, 0
  %v324 = vsel %vm264, %v311, 0
  %326 = vmatpush.msra.mxu0 0.0
  %327 = vmatpush.msra.mxu0 0.0
  %328 = vmatpush.msra.mxu0 0.0
  %329 = vmatpush.msra.mxu0 0.0
  %330 = vmatpush.msra.mxu0 0.0
  %331 = vmatpush.msra.mxu0 0.0
  %332 = vmatpush.msra.mxu0 0.0
  %333 = vmatpush.msra.mxu0 0.0
  %334 = vmatpush.msra.mxu0 0.0
  %335 = vmatpush.msra.mxu0 0.0
  %336 = vmatpush.msra.mxu0 0.0
  %337 = vmatpush.msra.mxu0 0.0
  %338 = vmatpush.msra.mxu0 0.0
  %339 = vmatpush.msra.mxu0 %v324
  %340 = vmatpush.msra.mxu0 %v312
  %341 = vmatpush.msra.mxu0 %v310
  %342 = vmatmul.f32.gmra.mxu0 %v316
  %v343 = vpop.f32.mrf.mxu0
  %v344 = vadd.f32 0.0, %v343
  %345 = vmatmul.f32.gmra.mxu0 %v319
  %v346 = vpop.f32.mrf.mxu0
  %v347 = vadd.f32 0.0, %v346
  %348 = vmatmul.f32.gmra.mxu0 %v322
  %v349 = vpop.f32.mrf.mxu0
  %v350 = vadd.f32 0.0, %v349
  %351 = vdwg.mxu0
  %v355 = vrot.slane %v344, 7
  %v356 = vrot.slane %v347, 7
  %v357 = vsel %vm264, %v355, %v356
  %v358 = vrot.slane %v350, 7
  %v359 = vsel %vm264, %v356, %v358
  %v361 = vsel %vm264, %v292, %v355
  %v363 = vperm.slane %v190, 0
  %v366 = vsel %vm37, %v286, 0
  %v369 = vsel %vm37, %v289, 0
  %v372 = vsel %vm37, %v361, 0
  %v374 = vsel %vm37, %v357, 0
  %v376 = vsel %vm37, %v359, 0
  %378 = vmatpush.msra.mxu0 0.0
  %379 = vmatpush.msra.mxu0 0.0
  %380 = vmatpush.msra.mxu0 0.0
  %381 = vmatpush.msra.mxu0 0.0
  %382 = vmatpush.msra.mxu0 0.0
  %383 = vmatpush.msra.mxu0 0.0
  %384 = vmatpush.msra.mxu0 0.0
  %385 = vmatpush.msra.mxu0 0.0
  %386 = vmatpush.msra.mxu0 0.0
  %387 = vmatpush.msra.mxu0 0.0
  %388 = vmatpush.msra.mxu0 0.0
  %389 = vmatpush.msra.mxu0 0.0
  %390 = vmatpush.msra.mxu0 %v186
  %391 = vmatpush.msra.mxu0 %v185
  %392 = vmatpush.msra.mxu0 %v184
  %393 = vmatpush.msra.mxu0 %v183
  %394 = vmatmul.f32.gmra.mxu0 %v366
  %v395 = vpop.f32.mrf.mxu0
  %v396 = vadd.f32 %v363, %v395
  %397 = vmatmul.f32.gmra.mxu0 %v369
  %v398 = vpop.f32.mrf.mxu0
  %v399 = vadd.f32 %v363, %v398
  %400 = vmatmul.f32.gmra.mxu0 %v372
  %v401 = vpop.f32.mrf.mxu0
  %v402 = vadd.f32 %v363, %v401
  %403 = vmatmul.f32.gmra.mxu0 %v374
  %v404 = vpop.f32.mrf.mxu0
  %v405 = vadd.f32 %v363, %v404
  %406 = vmatmul.f32.gmra.mxu0 %v376
  %v407 = vpop.f32.mrf.mxu0
  %v408 = vadd.f32 %v363, %v407
  %409 = vdwg.mxu0
  %v410 = vmax.f32 %v396, 0.0
  %v411 = vmax.f32 %v399, 0.0
  %v412 = vmax.f32 %v402, 0.0
  %v413 = vmax.f32 %v405, 0.0
  %v414 = vmax.f32 %v408, 0.0
  %v415 = vadd.f32 %v410, %v167
  %v416 = vadd.f32 %v411, %v168
  %v417 = vadd.f32 %v412, %v169
  %v418 = vadd.f32 %v413, %v170
  %v419 = vadd.f32 %v414, %v171
  %v420 = vsel %vm37, %v415, 0.0
  %421 = vadd.xlane.f32.xlu0 %v420
  %v422 = vpop.xlane.xlu0 %421
  %v423 = vsel %vm37, %v416, 0.0
  %424 = vadd.xlane.f32.xlu0 %v423
  %v425 = vpop.xlane.xlu0 %424
  %v426 = vsel %vm37, %v417, 0.0
  %427 = vadd.xlane.f32.xlu0 %v426
  %v428 = vpop.xlane.xlu0 %427
  %v429 = vsel %vm37, %v418, 0.0
  %430 = vadd.xlane.f32.xlu0 %v429
  %v431 = vpop.xlane.xlu0 %430
  %v432 = vsel %vm50, %v419, 0.0
  %433 = vadd.xlane.f32.xlu0 %v432
  %v434 = vpop.xlane.xlu0 %433
  %v435 = vmul.f32 %v422, %v60
  %v436 = vmul.f32 %v425, %v60
  %v437 = vmul.f32 %v428, %v60
  %v438 = vmul.f32 %v431, %v60
  %v439 = vmul.f32 %v434, %v60
  %v440 = vsub.f32 %v415, %v435
  %v441 = vsub.f32 %v416, %v436
  %v442 = vsub.f32 %v417, %v437
  %v443 = vsub.f32 %v418, %v438
  %v444 = vsub.f32 %v419, %v439
  %v445 = vmul.f32 %v440, %v440
  %v446 = vmul.f32 %v441, %v441
  %v447 = vmul.f32 %v442, %v442
  %v448 = vmul.f32 %v443, %v443
  %v449 = vmul.f32 %v444, %v444
  %v450 = vsel %vm37, %v445, 0.0
  %451 = vadd.xlane.f32.xlu0 %v450
  %v452 = vpop.xlane.xlu0 %451
  %v453 = vsel %vm37, %v446, 0.0
  %454 = vadd.xlane.f32.xlu0 %v453
  %v455 = vpop.xlane.xlu0 %454
  %v456 = vsel %vm37, %v447, 0.0
  %457 = vadd.xlane.f32.xlu0 %v456
  %v458 = vpop.xlane.xlu0 %457
  %v459 = vsel %vm37, %v448, 0.0
  %460 = vadd.xlane.f32.xlu0 %v459
  %v461 = vpop.xlane.xlu0 %460
  %v462 = vsel %vm50, %v449, 0.0
  %463 = vadd.xlane.f32.xlu0 %v462
  %v464 = vpop.xlane.xlu0 %463
  %v465 = vmul.f32 %v452, %v60
  %v466 = vmul.f32 %v455, %v60
  %v467 = vmul.f32 %v458, %v60
  %v468 = vmul.f32 %v461, %v60
  %v469 = vmul.f32 %v464, %v60
  %v470 = vadd.f32 %v465, 1e-05
  %v471 = vadd.f32 %v466, 1e-05
  %v472 = vadd.f32 %v467, 1e-05
  %v473 = vadd.f32 %v468, 1e-05
  %v474 = vadd.f32 %v469, 1e-05
  %v475 = vrsqrt.pop %v470
  %v476 = vmul.f32 %v475, %v470
  %v477 = vmul.f32 %v476, %v475
  %v478 = vmul.f32 0.5, %v477
  %v479 = vsub.f32 1.5, %v478
  %v480 = vmul.f32 %v475, %v479
  %vm481 = vweird.f32 %v470
  %vm482 = vweird.f32 %v475
  %vm483 = vmor %vm481, %vm482
  %v484 = vsel %vm483, %v475, %v480
  %v485 = vrsqrt.pop %v471
  %v486 = vmul.f32 %v485, %v471
  %v487 = vmul.f32 %v486, %v485
  %v488 = vmul.f32 0.5, %v487
  %v489 = vsub.f32 1.5, %v488
  %v490 = vmul.f32 %v485, %v489
  %vm491 = vweird.f32 %v471
  %vm492 = vweird.f32 %v485
  %vm493 = vmor %vm491, %vm492
  %v494 = vsel %vm493, %v485, %v490
  %v495 = vrsqrt.pop %v472
  %v496 = vmul.f32 %v495, %v472
  %v497 = vmul.f32 %v496, %v495
  %v498 = vmul.f32 0.5, %v497
  %v499 = vsub.f32 1.5, %v498
  %v500 = vmul.f32 %v495, %v499
  %vm501 = vweird.f32 %v472
  %vm502 = vweird.f32 %v495
  %vm503 = vmor %vm501, %vm502
  %v504 = vsel %vm503, %v495, %v500
  %v505 = vrsqrt.pop %v473
  %v506 = vmul.f32 %v505, %v473
  %v507 = vmul.f32 %v506, %v505
  %v508 = vmul.f32 0.5, %v507
  %v509 = vsub.f32 1.5, %v508
  %v510 = vmul.f32 %v505, %v509
  %vm511 = vweird.f32 %v473
  %vm512 = vweird.f32 %v505
  %vm513 = vmor %vm511, %vm512
  %v514 = vsel %vm513, %v505, %v510
  %v515 = vrsqrt.pop %v474
  %v516 = vmul.f32 %v515, %v474
  %v517 = vmul.f32 %v516, %v515
  %v518 = vmul.f32 0.5, %v517
  %v519 = vsub.f32 1.5, %v518
  %v520 = vmul.f32 %v515, %v519
  %vm521 = vweird.f32 %v474
  %vm522 = vweird.f32 %v515
  %vm523 = vmor %vm521, %vm522
  %v524 = vsel %vm523, %v515, %v520
  %v525 = vmul.f32 %v440, %v484
  %v526 = vmul.f32 %v441, %v494
  %v527 = vmul.f32 %v442, %v504
  %v528 = vmul.f32 %v443, %v514
  %v529 = vmul.f32 %v444, %v524
  %v531 = vperm.slane %v192, 0
  %v533 = vmul.f32 %v525, %v531
  %v534 = vmul.f32 %v526, %v531
  %v535 = vmul.f32 %v527, %v531
  %v536 = vmul.f32 %v528, %v531
  %v537 = vmul.f32 %v529, %v531
  %v539 = vperm.slane %v194, 0
  %v541 = vadd.f32 %v533, %v539
  %v542 = vadd.f32 %v534, %v539
  %v543 = vadd.f32 %v535, %v539
  %v544 = vadd.f32 %v536, %v539
  %v545 = vadd.f32 %v537, %v539
  %s546 = scalar_lea.vmem %s7, 40
  %547 = vst.msk [vmem:[%s546] sm:$0xff] %vm37, %v541
  %548 = vst.msk [vmem:[%s546 + $0x8] sm:$0xff] %vm37, %v542
  %549 = vst.msk [vmem:[%s546 + $0x10] sm:$0xff] %vm37, %v543
  %550 = vst.msk [vmem:[%s546 + $0x18] sm:$0xff] %vm37, %v544
  %551 = vst.msk [vmem:[%s546 + $0x20] sm:$0x3] %vm50, %v545
  %s552 = scalar_lea.vmem %s3, 128
  %v553 = vld [vmem:[%s552] sm:$0xff]
  %v554 = vld [vmem:[%s552 + $0x8] sm:$0xff]
  %v555 = vld [vmem:[%s552 + $0x10] sm:$0xff]
  %v556 = vld [vmem:[%s552 + $0x18] sm:$0xff]
  %s557 = scalar_lea.vmem %s3, 160
  %v558 = vld [vmem:[%s557] sm:$0xff]
  %v559 = vld [vmem:[%s557 + $0x8] sm:$0xff]
  %v560 = vld [vmem:[%s557 + $0x10] sm:$0xff]
  %v561 = vld [vmem:[%s557 + $0x18] sm:$0xff]
  %s562 = scalar_lea.vmem %s3, 192
  %v563 = vld [vmem:[%s562] sm:$0xff]
  %v564 = vld [vmem:[%s562 + $0x8] sm:$0xff]
  %v565 = vld [vmem:[%s562 + $0x10] sm:$0xff]
  %v566 = vld [vmem:[%s562 + $0x18] sm:$0xff]
  %s567 = scalar_lea.vmem %s3, 224
  %v568 = vld [vmem:[%s567] sm:$0xff]
  %v569 = vld [vmem:[%s567 + $0x8] sm:$0xff]
  %v570 = vld [vmem:[%s567 + $0x10] sm:$0xff]
  %v571 = vld [vmem:[%s567 + $0x18] sm:$0xff]
  %s572 = scalar_lea.vmem %s4, 6
  %v573 = vld [vmem:[%s572] sm:$0x1]
  %s574 = scalar_lea.vmem %s4, 7
  %v575 = vld [vmem:[%s574] sm:$0x1]
  %s576 = scalar_lea.vmem %s4, 8
  %v577 = vld [vmem:[%s576] sm:$0x1]
  %s578 = scalar_lea.vmem %s4, 9
  %v579 = vld [vmem:[%s578] sm:$0x1]
  %s580 = scalar_lea.vmem %s4, 10
  %v581 = vld [vmem:[%s580] sm:$0x1]
  %s582 = scalar_lea.vmem %s4, 11
  %v583 = vld [vmem:[%s582] sm:$0x1]
  %v585 = vperm.slane %v577, 0
  %v588 = vsel %vm37, %v541, 0
  %v591 = vsel %vm37, %v542, 0
  %v594 = vsel %vm37, %v543, 0
  %v597 = vsel %vm37, %v544, 0
  %v600 = vsel %vm37, %v545, 0
  %602 = vmatpush.msra.mxu0 0.0
  %603 = vmatpush.msra.mxu0 0.0
  %604 = vmatpush.msra.mxu0 0.0
  %605 = vmatpush.msra.mxu0 0.0
  %606 = vmatpush.msra.mxu0 0.0
  %607 = vmatpush.msra.mxu0 0.0
  %608 = vmatpush.msra.mxu0 0.0
  %609 = vmatpush.msra.mxu0 0.0
  %610 = vmatpush.msra.mxu0 0.0
  %611 = vmatpush.msra.mxu0 0.0
  %612 = vmatpush.msra.mxu0 0.0
  %613 = vmatpush.msra.mxu0 0.0
  %614 = vmatpush.msra.mxu0 %v566
  %615 = vmatpush.msra.mxu0 %v565
  %616 = vmatpush.msra.mxu0 %v564
  %617 = vmatpush.msra.mxu0 %v563
  %618 = vmatmul.f32.gmra.mxu0 %v588
  %v619 = vpop.f32.mrf.mxu0
  %v620 = vadd.f32 %v585, %v619
  %621 = vmatmul.f32.gmra.mxu0 %v591
  %v622 = vpop.f32.mrf.mxu0
  %v623 = vadd.f32 %v585, %v622
  %624 = vmatmul.f32.gmra.mxu0 %v594
  %v625 = vpop.f32.mrf.mxu0
  %v626 = vadd.f32 %v585, %v625
  %627 = vmatmul.f32.gmra.mxu0 %v597
  %v628 = vpop.f32.mrf.mxu0
  %v629 = vadd.f32 %v585, %v628
  %630 = vmatmul.f32.gmra.mxu0 %v600
  %v631 = vpop.f32.mrf.mxu0
  %v632 = vadd.f32 %v585, %v631
  %633 = vdwg.mxu0
  %v635 = vperm.slane %v573, 0
  %637 = vmatpush.msra.mxu0 0.0
  %638 = vmatpush.msra.mxu0 0.0
  %639 = vmatpush.msra.mxu0 0.0
  %640 = vmatpush.msra.mxu0 0.0
  %641 = vmatpush.msra.mxu0 0.0
  %642 = vmatpush.msra.mxu0 0.0
  %643 = vmatpush.msra.mxu0 0.0
  %644 = vmatpush.msra.mxu0 0.0
  %645 = vmatpush.msra.mxu0 0.0
  %646 = vmatpush.msra.mxu0 0.0
  %647 = vmatpush.msra.mxu0 0.0
  %648 = vmatpush.msra.mxu0 0.0
  %649 = vmatpush.msra.mxu0 %v556
  %650 = vmatpush.msra.mxu0 %v555
  %651 = vmatpush.msra.mxu0 %v554
  %652 = vmatpush.msra.mxu0 %v553
  %653 = vmatmul.f32.gmra.mxu0 %v588
  %v654 = vpop.f32.mrf.mxu0
  %v655 = vadd.f32 %v635, %v654
  %656 = vmatmul.f32.gmra.mxu0 %v591
  %v657 = vpop.f32.mrf.mxu0
  %v658 = vadd.f32 %v635, %v657
  %659 = vmatmul.f32.gmra.mxu0 %v594
  %v660 = vpop.f32.mrf.mxu0
  %v661 = vadd.f32 %v635, %v660
  %662 = vmatmul.f32.gmra.mxu0 %v597
  %v663 = vpop.f32.mrf.mxu0
  %v664 = vadd.f32 %v635, %v663
  %665 = vmatmul.f32.gmra.mxu0 %v600
  %v666 = vpop.f32.mrf.mxu0
  %v667 = vadd.f32 %v635, %v666
  %668 = vdwg.mxu0
  %v670 = vperm.slane %v575, 0
  %672 = vmatpush.msra.mxu0 0.0
  %673 = vmatpush.msra.mxu0 0.0
  %674 = vmatpush.msra.mxu0 0.0
  %675 = vmatpush.msra.mxu0 0.0
  %676 = vmatpush.msra.mxu0 0.0
  %677 = vmatpush.msra.mxu0 0.0
  %678 = vmatpush.msra.mxu0 0.0
  %679 = vmatpush.msra.mxu0 0.0
  %680 = vmatpush.msra.mxu0 0.0
  %681 = vmatpush.msra.mxu0 0.0
  %682 = vmatpush.msra.mxu0 0.0
  %683 = vmatpush.msra.mxu0 0.0
  %684 = vmatpush.msra.mxu0 %v561
  %685 = vmatpush.msra.mxu0 %v560
  %686 = vmatpush.msra.mxu0 %v559
  %687 = vmatpush.msra.mxu0 %v558
  %688 = vmatmul.f32.gmra.mxu0 %v588
  %v689 = vpop.f32.mrf.mxu0
  %v690 = vadd.f32 %v670, %v689
  %691 = vmatmul.f32.gmra.mxu0 %v591
  %v692 = vpop.f32.mrf.mxu0
  %v693 = vadd.f32 %v670, %v692
  %694 = vmatmul.f32.gmra.mxu0 %v594
  %v695 = vpop.f32.mrf.mxu0
  %v696 = vadd.f32 %v670, %v695
  %697 = vmatmul.f32.gmra.mxu0 %v597
  %v698 = vpop.f32.mrf.mxu0
  %v699 = vadd.f32 %v670, %v698
  %700 = vmatmul.f32.gmra.mxu0 %v600
  %v701 = vpop.f32.mrf.mxu0
  %v702 = vadd.f32 %v670, %v701
  %703 = vdwg.mxu0
  %v705 = vsel %vm37, %v655, 0
  %v708 = vsel %vm37, %v658, 0
  %v711 = vsel %vm37, %v661, 0
  %v714 = vsel %vm37, %v690, 0
  %v717 = vsel %vm37, %v693, 0
  %v720 = vsel %vm37, %v696, 0
  %722 = vmatpush.xpose.msra.mxu0 0.0
  %723 = vmatpush.xpose.msra.mxu0 0.0
  %724 = vmatpush.xpose.msra.mxu0 0.0
  %725 = vmatpush.xpose.msra.mxu0 0.0
  %726 = vmatpush.xpose.msra.mxu0 0.0
  %727 = vmatpush.xpose.msra.mxu0 0.0
  %728 = vmatpush.xpose.msra.mxu0 0.0
  %729 = vmatpush.xpose.msra.mxu0 0.0
  %730 = vmatpush.xpose.msra.mxu0 0.0
  %731 = vmatpush.xpose.msra.mxu0 0.0
  %732 = vmatpush.xpose.msra.mxu0 0.0
  %733 = vmatpush.xpose.msra.mxu0 0.0
  %734 = vmatpush.xpose.msra.mxu0 0.0
  %735 = vmatpush.xpose.msra.mxu0 %v720
  %736 = vmatpush.xpose.msra.mxu0 %v717
  %737 = vmatpush.xpose.msra.mxu0 %v714
  %738 = vmatmul.f32.gmra.mxu0 %v705
  %v739 = vpop.f32.mrf.mxu0
  %v740 = vadd.f32 0.0, %v739
  %741 = vmatmul.f32.gmra.mxu0 %v708
  %v742 = vpop.f32.mrf.mxu0
  %v743 = vadd.f32 0.0, %v742
  %744 = vmatmul.f32.gmra.mxu0 %v711
  %v745 = vpop.f32.mrf.mxu0
  %v746 = vadd.f32 0.0, %v745
  %747 = vdwg.mxu0
  %v748 = vmul.f32 %v740, 0.17677669
  %v749 = vmul.f32 %v743, 0.17677669
  %v750 = vmul.f32 %v746, 0.17677669
  %v751 = vld [vmem:[%s1] sm:$0x1]
  %v753 = vperm.slane %v751, 0
  %v755 = vadd.f32 %v748, %v753
  %v756 = vadd.f32 %v749, %v753
  %v757 = vadd.f32 %v750, %v753
  %v758 = vsel %vm248, %v755, -inf
  %759 = vmax.xlane.f32.xlu0 %v758
  %v760 = vpop.xlane.xlu0 %759
  %v761 = vsel %vm248, %v756, -inf
  %762 = vmax.xlane.f32.xlu0 %v761
  %v763 = vpop.xlane.xlu0 %762
  %vm764 = vcmask 131072
  %v765 = vsel %vm764, %v757, -inf
  %766 = vmax.xlane.f32.xlu0 %v765
  %v767 = vpop.xlane.xlu0 %766
  %v768 = vsub.f32 %v755, %v760
  %v769 = vsub.f32 %v756, %v763
  %v770 = vsub.f32 %v757, %v767
  %v771 = vmul.f32 %v768, 1.442695
  %v772 = vpow.pop %v771
  %v773 = vmul.f32 %v769, 1.442695
  %v774 = vpow.pop %v773
  %v775 = vmul.f32 %v770, 1.442695
  %v776 = vpow.pop %v775
  %v777 = vsel %vm248, %v772, 0.0
  %778 = vadd.xlane.f32.xlu0 %v777
  %v779 = vpop.xlane.xlu0 %778
  %v780 = vsel %vm248, %v774, 0.0
  %781 = vadd.xlane.f32.xlu0 %v780
  %v782 = vpop.xlane.xlu0 %781
  %v783 = vsel %vm764, %v776, 0.0
  %784 = vadd.xlane.f32.xlu0 %v783
  %v785 = vpop.xlane.xlu0 %784
  %v786 = vrcp.pop %v779
  %v787 = vmul.f32 %v779, %v786
  %v788 = vsub.f32 1.0, %v787
  %v789 = vmul.f32 %v786, %v788
  %v790 = vadd.f32 %v786, %v789
  %vm791 = vweird.f32 %v779
  %vm792 = vweird.f32 %v786
  %vm793 = vmor %vm791, %vm792
  %v794 = vsel %vm793, %v786, %v790
  %v795 = vand.u32 2147483647, %v779
  %vm796 = vcmp.eq.f32.partialorder %v795, 8.507059e+37
  %v797 = vand.u32 %v779, 2147483648
  %v798 = vor.u32 1.1754944e-38, %v797
  %v799 = vsel %vm796, %v798, %v794
  %v800 = vrcp.pop %v782
  %v801 = vmul.f32 %v782, %v800
  %v802 = vsub.f32 1.0, %v801
  %v803 = vmul.f32 %v800, %v802
  %v804 = vadd.f32 %v800, %v803
  %vm805 = vweird.f32 %v782
  %vm806 = vweird.f32 %v800
  %vm807 = vmor %vm805, %vm806
  %v808 = vsel %vm807, %v800, %v804
  %v809 = vand.u32 2147483647, %v782
  %vm810 = vcmp.eq.f32.partialorder %v809, 8.507059e+37
  %v811 = vand.u32 %v782, 2147483648
  %v812 = vor.u32 1.1754944e-38, %v811
  %v813 = vsel %vm810, %v812, %v808
  %v814 = vrcp.pop %v785
  %v815 = vmul.f32 %v785, %v814
  %v816 = vsub.f32 1.0, %v815
  %v817 = vmul.f32 %v814, %v816
  %v818 = vadd.f32 %v814, %v817
  %vm819 = vweird.f32 %v785
  %vm820 = vweird.f32 %v814
  %vm821 = vmor %vm819, %vm820
  %v822 = vsel %vm821, %v814, %v818
  %v823 = vand.u32 2147483647, %v785
  %vm824 = vcmp.eq.f32.partialorder %v823, 8.507059e+37
  %v825 = vand.u32 %v785, 2147483648
  %v826 = vor.u32 1.1754944e-38, %v825
  %v827 = vsel %vm824, %v826, %v822
  %v828 = vmul.f32 %v772, %v799
  %v829 = vmul.f32 %v774, %v813
  %v830 = vmul.f32 %v776, %v827
  %v831 = vsel %vm248, %v828, 0.0
  %v832 = vsel %vm248, %v829, 0.0
  %v833 = vsel %vm248, %v830, 0.0
  %s834 = scalar_lea.vmem %s8, 48
  %835 = vst [vmem:[%s834] sm:$0xff] %v831
  %836 = vst [vmem:[%s834 + $0x8] sm:$0xff] %v832
  %837 = vst [vmem:[%s834 + $0x10] sm:$0x1] %v833
  %v839 = vsel %vm248, %v828, 0
  %v842 = vsel %vm248, %v829, 0
  %v845 = vsel %vm248, %v830, 0
  %v848 = vsel %vm264, %v626, 0
  %850 = vmatpush.msra.mxu0 0.0
  %851 = vmatpush.msra.mxu0 0.0
  %852 = vmatpush.msra.mxu0 0.0
  %853 = vmatpush.msra.mxu0 0.0
  %854 = vmatpush.msra.mxu0 0.0
  %855 = vmatpush.msra.mxu0 0.0
  %856 = vmatpush.msra.mxu0 0.0
  %857 = vmatpush.msra.mxu0 0.0
  %858 = vmatpush.msra.mxu0 0.0
  %859 = vmatpush.msra.mxu0 0.0
  %860 = vmatpush.msra.mxu0 0.0
  %861 = vmatpush.msra.mxu0 0.0
  %862 = vmatpush.msra.mxu0 0.0
  %863 = vmatpush.msra.mxu0 %v848
  %864 = vmatpush.msra.mxu0 %v623
  %865 = vmatpush.msra.mxu0 %v620
  %866 = vmatmul.f32.gmra.mxu0 %v839
  %v867 = vpop.f32.mrf.mxu0
  %v868 = vadd.f32 0.0, %v867
  %869 = vmatmul.f32.gmra.mxu0 %v842
  %v870 = vpop.f32.mrf.mxu0
  %v871 = vadd.f32 0.0, %v870
  %872 = vmatmul.f32.gmra.mxu0 %v845
  %v873 = vpop.f32.mrf.mxu0
  %v874 = vadd.f32 0.0, %v873
  %875 = vdwg.mxu0
  %v878 = vrot.slane %v661, 1
  %v879 = vrot.slane %v664, 1
  %v880 = vsel %vm307, %v878, %v879
  %v881 = vrot.slane %v667, 1
  %v882 = vsel %vm307, %v879, %v881
  %v885 = vrot.slane %v696, 1
  %v886 = vrot.slane %v699, 1
  %v887 = vsel %vm307, %v885, %v886
  %v888 = vrot.slane %v702, 1
  %v889 = vsel %vm307, %v886, %v888
  %v890 = vsel %vm37, %v880, 0
  %v892 = vsel %vm37, %v882, 0
  %v894 = vsel %vm37, %v881, 0
  %v896 = vsel %vm37, %v887, 0
  %v898 = vsel %vm37, %v889, 0
  %v900 = vsel %vm37, %v888, 0
  %902 = vmatpush.xpose.msra.mxu0 0.0
  %903 = vmatpush.xpose.msra.mxu0 0.0
  %904 = vmatpush.xpose.msra.mxu0 0.0
  %905 = vmatpush.xpose.msra.mxu0 0.0
  %906 = vmatpush.xpose.msra.mxu0 0.0
  %907 = vmatpush.xpose.msra.mxu0 0.0
  %908 = vmatpush.xpose.msra.mxu0 0.0
  %909 = vmatpush.xpose.msra.mxu0 0.0
  %910 = vmatpush.xpose.msra.mxu0 0.0
  %911 = vmatpush.xpose.msra.mxu0 0.0
  %912 = vmatpush.xpose.msra.mxu0 0.0
  %913 = vmatpush.xpose.msra.mxu0 0.0
  %914 = vmatpush.xpose.msra.mxu0 0.0
  %915 = vmatpush.xpose.msra.mxu0 %v900
  %916 = vmatpush.xpose.msra.mxu0 %v898
  %917 = vmatpush.xpose.msra.mxu0 %v896
  %918 = vmatmul.f32.gmra.mxu0 %v890
  %v919 = vpop.f32.mrf.mxu0
  %v920 = vadd.f32 0.0, %v919
  %921 = vmatmul.f32.gmra.mxu0 %v892
  %v922 = vpop.f32.mrf.mxu0
  %v923 = vadd.f32 0.0, %v922
  %924 = vmatmul.f32.gmra.mxu0 %v894
  %v925 = vpop.f32.mrf.mxu0
  %v926 = vadd.f32 0.0, %v925
  %927 = vdwg.mxu0
  %v928 = vmul.f32 %v920, 0.17677669
  %v929 = vmul.f32 %v923, 0.17677669
  %v930 = vmul.f32 %v926, 0.17677669
  %s931 = scalar_lea.vmem %s1, 1
  %v932 = vld [vmem:[%s931] sm:$0x1]
  %v934 = vperm.slane %v932, 0
  %v936 = vadd.f32 %v928, %v934
  %v937 = vadd.f32 %v929, %v934
  %v938 = vadd.f32 %v930, %v934
  %v939 = vsel %vm248, %v936, -inf
  %940 = vmax.xlane.f32.xlu0 %v939
  %v941 = vpop.xlane.xlu0 %940
  %v942 = vsel %vm248, %v937, -inf
  %943 = vmax.xlane.f32.xlu0 %v942
  %v944 = vpop.xlane.xlu0 %943
  %v945 = vsel %vm764, %v938, -inf
  %946 = vmax.xlane.f32.xlu0 %v945
  %v947 = vpop.xlane.xlu0 %946
  %v948 = vsub.f32 %v936, %v941
  %v949 = vsub.f32 %v937, %v944
  %v950 = vsub.f32 %v938, %v947
  %v951 = vmul.f32 %v948, 1.442695
  %v952 = vpow.pop %v951
  %v953 = vmul.f32 %v949, 1.442695
  %v954 = vpow.pop %v953
  %v955 = vmul.f32 %v950, 1.442695
  %v956 = vpow.pop %v955
  %v957 = vsel %vm248, %v952, 0.0
  %958 = vadd.xlane.f32.xlu0 %v957
  %v959 = vpop.xlane.xlu0 %958
  %v960 = vsel %vm248, %v954, 0.0
  %961 = vadd.xlane.f32.xlu0 %v960
  %v962 = vpop.xlane.xlu0 %961
  %v963 = vsel %vm764, %v956, 0.0
  %964 = vadd.xlane.f32.xlu0 %v963
  %v965 = vpop.xlane.xlu0 %964
  %v966 = vrcp.pop %v959
  %v967 = vmul.f32 %v959, %v966
  %v968 = vsub.f32 1.0, %v967
  %v969 = vmul.f32 %v966, %v968
  %v970 = vadd.f32 %v966, %v969
  %vm971 = vweird.f32 %v959
  %vm972 = vweird.f32 %v966
  %vm973 = vmor %vm971, %vm972
  %v974 = vsel %vm973, %v966, %v970
  %v975 = vand.u32 2147483647, %v959
  %vm976 = vcmp.eq.f32.partialorder %v975, 8.507059e+37
  %v977 = vand.u32 %v959, 2147483648
  %v978 = vor.u32 1.1754944e-38, %v977
  %v979 = vsel %vm976, %v978, %v974
  %v980 = vrcp.pop %v962
  %v981 = vmul.f32 %v962, %v980
  %v982 = vsub.f32 1.0, %v981
  %v983 = vmul.f32 %v980, %v982
  %v984 = vadd.f32 %v980, %v983
  %vm985 = vweird.f32 %v962
  %vm986 = vweird.f32 %v980
  %vm987 = vmor %vm985, %vm986
  %v988 = vsel %vm987, %v980, %v984
  %v989 = vand.u32 2147483647, %v962
  %vm990 = vcmp.eq.f32.partialorder %v989, 8.507059e+37
  %v991 = vand.u32 %v962, 2147483648
  %v992 = vor.u32 1.1754944e-38, %v991
  %v993 = vsel %vm990, %v992, %v988
  %v994 = vrcp.pop %v965
  %v995 = vmul.f32 %v965, %v994
  %v996 = vsub.f32 1.0, %v995
  %v997 = vmul.f32 %v994, %v996
  %v998 = vadd.f32 %v994, %v997
  %vm999 = vweird.f32 %v965
  %vm1000 = vweird.f32 %v994
  %vm1001 = vmor %vm999, %vm1000
  %v1002 = vsel %vm1001, %v994, %v998
  %v1003 = vand.u32 2147483647, %v965
  %vm1004 = vcmp.eq.f32.partialorder %v1003, 8.507059e+37
  %v1005 = vand.u32 %v965, 2147483648
  %v1006 = vor.u32 1.1754944e-38, %v1005
  %v1007 = vsel %vm1004, %v1006, %v1002
  %v1008 = vmul.f32 %v952, %v979
  %v1009 = vmul.f32 %v954, %v993
  %v1010 = vmul.f32 %v956, %v1007
  %v1011 = vsel %vm248, %v1008, 0.0
  %v1012 = vsel %vm248, %v1009, 0.0
  %v1013 = vsel %vm248, %v1010, 0.0
  %s1014 = scalar_lea.vmem %s8, 72
  %1015 = vst [vmem:[%s1014] sm:$0xff] %v1011
  %1016 = vst [vmem:[%s1014 + $0x8] sm:$0xff] %v1012
  %1017 = vst [vmem:[%s1014 + $0x10] sm:$0x1] %v1013
  %v1020 = vrot.slane %v626, 1
  %v1021 = vrot.slane %v629, 1
  %v1022 = vsel %vm307, %v1020, %v1021
  %v1023 = vrot.slane %v632, 1
  %v1024 = vsel %vm307, %v1021, %v1023
  %v1028 = vsel %vm248, %v1008, 0
  %v1031 = vsel %vm248, %v1009, 0
  %v1034 = vsel %vm248, %v1010, 0
  %v1036 = vsel %vm264, %v1023, 0
  %1038 = vmatpush.msra.mxu0 0.0
  %1039 = vmatpush.msra.mxu0 0.0
  %1040 = vmatpush.msra.mxu0 0.0
  %1041 = vmatpush.msra.mxu0 0.0
  %1042 = vmatpush.msra.mxu0 0.0
  %1043 = vmatpush.msra.mxu0 0.0
  %1044 = vmatpush.msra.mxu0 0.0
  %1045 = vmatpush.msra.mxu0 0.0
  %1046 = vmatpush.msra.mxu0 0.0
  %1047 = vmatpush.msra.mxu0 0.0
  %1048 = vmatpush.msra.mxu0 0.0
  %1049 = vmatpush.msra.mxu0 0.0
  %1050 = vmatpush.msra.mxu0 0.0
  %1051 = vmatpush.msra.mxu0 %v1036
  %1052 = vmatpush.msra.mxu0 %v1024
  %1053 = vmatpush.msra.mxu0 %v1022
  %1054 = vmatmul.f32.gmra.mxu0 %v1028
  %v1055 = vpop.f32.mrf.mxu0
  %v1056 = vadd.f32 0.0, %v1055
  %1057 = vmatmul.f32.gmra.mxu0 %v1031
  %v1058 = vpop.f32.mrf.mxu0
  %v1059 = vadd.f32 0.0, %v1058
  %1060 = vmatmul.f32.gmra.mxu0 %v1034
  %v1061 = vpop.f32.mrf.mxu0
  %v1062 = vadd.f32 0.0, %v1061
  %1063 = vdwg.mxu0
  %v1067 = vrot.slane %v1056, 7
  %v1068 = vrot.slane %v1059, 7
  %v1069 = vsel %vm264, %v1067, %v1068
  %v1070 = vrot.slane %v1062, 7
  %v1071 = vsel %vm264, %v1068, %v1070
  %v1073 = vsel %vm264, %v874, %v1067
  %v1075 = vperm.slane %v579, 0
  %v1078 = vsel %vm37, %v868, 0
  %v1081 = vsel %vm37, %v871, 0
  %v1084 = vsel %vm37, %v1073, 0
  %v1086 = vsel %vm37, %v1069, 0
  %v1088 = vsel %vm37, %v1071, 0
  %1090 = vmatpush.msra.mxu0 0.0
  %1091 = vmatpush.msra.mxu0 0.0
  %1092 = vmatpush.msra.mxu0 0.0
  %1093 = vmatpush.msra.mxu0 0.0
  %1094 = vmatpush.msra.mxu0 0.0
  %1095 = vmatpush.msra.mxu0 0.0
  %1096 = vmatpush.msra.mxu0 0.0
  %1097 = vmatpush.msra.mxu0 0.0
  %1098 = vmatpush.msra.mxu0 0.0
  %1099 = vmatpush.msra.mxu0 0.0
  %1100 = vmatpush.msra.mxu0 0.0
  %1101 = vmatpush.msra.mxu0 0.0
  %1102 = vmatpush.msra.mxu0 %v571
  %1103 = vmatpush.msra.mxu0 %v570
  %1104 = vmatpush.msra.mxu0 %v569
  %1105 = vmatpush.msra.mxu0 %v568
  %1106 = vmatmul.f32.gmra.mxu0 %v1078
  %v1107 = vpop.f32.mrf.mxu0
  %v1108 = vadd.f32 %v1075, %v1107
  %1109 = vmatmul.f32.gmra.mxu0 %v1081
  %v1110 = vpop.f32.mrf.mxu0
  %v1111 = vadd.f32 %v1075, %v1110
  %1112 = vmatmul.f32.gmra.mxu0 %v1084
  %v1113 = vpop.f32.mrf.mxu0
  %v1114 = vadd.f32 %v1075, %v1113
  %1115 = vmatmul.f32.gmra.mxu0 %v1086
  %v1116 = vpop.f32.mrf.mxu0
  %v1117 = vadd.f32 %v1075, %v1116
  %1118 = vmatmul.f32.gmra.mxu0 %v1088
  %v1119 = vpop.f32.mrf.mxu0
  %v1120 = vadd.f32 %v1075, %v1119
  %1121 = vdwg.mxu0
  %v1122 = vmax.f32 %v1108, 0.0
  %v1123 = vmax.f32 %v1111, 0.0
  %v1124 = vmax.f32 %v1114, 0.0
  %v1125 = vmax.f32 %v1117, 0.0
  %v1126 = vmax.f32 %v1120, 0.0
  %v1127 = vadd.f32 %v1122, %v541
  %v1128 = vadd.f32 %v1123, %v542
  %v1129 = vadd.f32 %v1124, %v543
  %v1130 = vadd.f32 %v1125, %v544
  %v1131 = vadd.f32 %v1126, %v545
  %v1132 = vsel %vm37, %v1127, 0.0
  %1133 = vadd.xlane.f32.xlu0 %v1132
  %v1134 = vpop.xlane.xlu0 %1133
  %v1135 = vsel %vm37, %v1128, 0.0
  %1136 = vadd.xlane.f32.xlu0 %v1135
  %v1137 = vpop.xlane.xlu0 %1136
  %v1138 = vsel %vm37, %v1129, 0.0
  %1139 = vadd.xlane.f32.xlu0 %v1138
  %v1140 = vpop.xlane.xlu0 %1139
  %v1141 = vsel %vm37, %v1130, 0.0
  %1142 = vadd.xlane.f32.xlu0 %v1141
  %v1143 = vpop.xlane.xlu0 %1142
  %v1144 = vsel %vm50, %v1131, 0.0
  %1145 = vadd.xlane.f32.xlu0 %v1144
  %v1146 = vpop.xlane.xlu0 %1145
  %v1147 = vmul.f32 %v1134, %v60
  %v1148 = vmul.f32 %v1137, %v60
  %v1149 = vmul.f32 %v1140, %v60
  %v1150 = vmul.f32 %v1143, %v60
  %v1151 = vmul.f32 %v1146, %v60
  %v1152 = vsub.f32 %v1127, %v1147
  %v1153 = vsub.f32 %v1128, %v1148
  %v1154 = vsub.f32 %v1129, %v1149
  %v1155 = vsub.f32 %v1130, %v1150
  %v1156 = vsub.f32 %v1131, %v1151
  %v1157 = vmul.f32 %v1152, %v1152
  %v1158 = vmul.f32 %v1153, %v1153
  %v1159 = vmul.f32 %v1154, %v1154
  %v1160 = vmul.f32 %v1155, %v1155
  %v1161 = vmul.f32 %v1156, %v1156
  %v1162 = vsel %vm37, %v1157, 0.0
  %1163 = vadd.xlane.f32.xlu0 %v1162
  %v1164 = vpop.xlane.xlu0 %1163
  %v1165 = vsel %vm37, %v1158, 0.0
  %1166 = vadd.xlane.f32.xlu0 %v1165
  %v1167 = vpop.xlane.xlu0 %1166
  %v1168 = vsel %vm37, %v1159, 0.0
  %1169 = vadd.xlane.f32.xlu0 %v1168
  %v1170 = vpop.xlane.xlu0 %1169
  %v1171 = vsel %vm37, %v1160, 0.0
  %1172 = vadd.xlane.f32.xlu0 %v1171
  %v1173 = vpop.xlane.xlu0 %1172
  %v1174 = vsel %vm50, %v1161, 0.0
  %1175 = vadd.xlane.f32.xlu0 %v1174
  %v1176 = vpop.xlane.xlu0 %1175
  %v1177 = vmul.f32 %v1164, %v60
  %v1178 = vmul.f32 %v1167, %v60
  %v1179 = vmul.f32 %v1170, %v60
  %v1180 = vmul.f32 %v1173, %v60
  %v1181 = vmul.f32 %v1176, %v60
  %v1182 = vadd.f32 %v1177, 1e-05
  %v1183 = vadd.f32 %v1178, 1e-05
  %v1184 = vadd.f32 %v1179, 1e-05
  %v1185 = vadd.f32 %v1180, 1e-05
  %v1186 = vadd.f32 %v1181, 1e-05
  %v1187 = vrsqrt.pop %v1182
  %v1188 = vmul.f32 %v1187, %v1182
  %v1189 = vmul.f32 %v1188, %v1187
  %v1190 = vmul.f32 0.5, %v1189
  %v1191 = vsub.f32 1.5, %v1190
  %v1192 = vmul.f32 %v1187, %v1191
  %vm1193 = vweird.f32 %v1182
  %vm1194 = vweird.f32 %v1187
  %vm1195 = vmor %vm1193, %vm1194
  %v1196 = vsel %vm1195, %v1187, %v1192
  %v1197 = vrsqrt.pop %v1183
  %v1198 = vmul.f32 %v1197, %v1183
  %v1199 = vmul.f32 %v1198, %v1197
  %v1200 = vmul.f32 0.5, %v1199
  %v1201 = vsub.f32 1.5, %v1200
  %v1202 = vmul.f32 %v1197, %v1201
  %vm1203 = vweird.f32 %v1183
  %vm1204 = vweird.f32 %v1197
  %vm1205 = vmor %vm1203, %vm1204
  %v1206 = vsel %vm1205, %v1197, %v1202
  %v1207 = vrsqrt.pop %v1184
  %v1208 = vmul.f32 %v1207, %v1184
  %v1209 = vmul.f32 %v1208, %v1207
  %v1210 = vmul.f32 0.5, %v1209
  %v1211 = vsub.f32 1.5, %v1210
  %v1212 = vmul.f32 %v1207, %v1211
  %vm1213 = vweird.f32 %v1184
  %vm1214 = vweird.f32 %v1207
  %vm1215 = vmor %vm1213, %vm1214
  %v1216 = vsel %vm1215, %v1207, %v1212
  %v1217 = vrsqrt.pop %v1185
  %v1218 = vmul.f32 %v1217, %v1185
  %v1219 = vmul.f32 %v1218, %v1217
  %v1220 = vmul.f32 0.5, %v1219
  %v1221 = vsub.f32 1.5, %v1220
  %v1222 = vmul.f32 %v1217, %v1221
  %vm1223 = vweird.f32 %v1185
  %vm1224 = vweird.f32 %v1217
  %vm1225 = vmor %vm1223, %vm1224
  %v1226 = vsel %vm1225, %v1217, %v1222
  %v1227 = vrsqrt.pop %v1186
  %v1228 = vmul.f32 %v1227, %v1186
  %v1229 = vmul.f32 %v1228, %v1227
  %v1230 = vmul.f32 0.5, %v1229
  %v1231 = vsub.f32 1.5, %v1230
  %v1232 = vmul.f32 %v1227, %v1231
  %vm1233 = vweird.f32 %v1186
  %vm1234 = vweird.f32 %v1227
  %vm1235 = vmor %vm1233, %vm1234
  %v1236 = vsel %vm1235, %v1227, %v1232
  %v1237 = vmul.f32 %v1152, %v1196
  %v1238 = vmul.f32 %v1153, %v1206
  %v1239 = vmul.f32 %v1154, %v1216
  %v1240 = vmul.f32 %v1155, %v1226
  %v1241 = vmul.f32 %v1156, %v1236
  %v1243 = vperm.slane %v581, 0
  %v1245 = vmul.f32 %v1237, %v1243
  %v1246 = vmul.f32 %v1238, %v1243
  %v1247 = vmul.f32 %v1239, %v1243
  %v1248 = vmul.f32 %v1240, %v1243
  %v1249 = vmul.f32 %v1241, %v1243
  %v1251 = vperm.slane %v583, 0
  %v1253 = vadd.f32 %v1245, %v1251
  %v1254 = vadd.f32 %v1246, %v1251
  %v1255 = vadd.f32 %v1247, %v1251
  %v1256 = vadd.f32 %v1248, %v1251
  %v1257 = vadd.f32 %v1249, %v1251
  %s1258 = scalar_lea.vmem %s7, 80
  %1259 = vst.msk [vmem:[%s1258] sm:$0xff] %vm37, %v1253
  %1260 = vst.msk [vmem:[%s1258 + $0x8] sm:$0xff] %vm37, %v1254
  %1261 = vst.msk [vmem:[%s1258 + $0x10] sm:$0xff] %vm37, %v1255
  %1262 = vst.msk [vmem:[%s1258 + $0x18] sm:$0xff] %vm37, %v1256
  %1263 = vst.msk [vmem:[%s1258 + $0x20] sm:$0x3] %vm50, %v1257
  %s1264 = scalar_lea.vmem %s3, 256
  %v1265 = vld [vmem:[%s1264] sm:$0xff]
  %v1266 = vld [vmem:[%s1264 + $0x8] sm:$0xff]
  %v1267 = vld [vmem:[%s1264 + $0x10] sm:$0xff]
  %v1268 = vld [vmem:[%s1264 + $0x18] sm:$0xff]
  %s1269 = scalar_lea.vmem %s3, 288
  %v1270 = vld [vmem:[%s1269] sm:$0xff]
  %v1271 = vld [vmem:[%s1269 + $0x8] sm:$0xff]
  %v1272 = vld [vmem:[%s1269 + $0x10] sm:$0xff]
  %v1273 = vld [vmem:[%s1269 + $0x18] sm:$0xff]
  %s1274 = scalar_lea.vmem %s3, 320
  %v1275 = vld [vmem:[%s1274] sm:$0xff]
  %v1276 = vld [vmem:[%s1274 + $0x8] sm:$0xff]
  %v1277 = vld [vmem:[%s1274 + $0x10] sm:$0xff]
  %v1278 = vld [vmem:[%s1274 + $0x18] sm:$0xff]
  %s1279 = scalar_lea.vmem %s3, 352
  %v1280 = vld [vmem:[%s1279] sm:$0xff]
  %v1281 = vld [vmem:[%s1279 + $0x8] sm:$0xff]
  %v1282 = vld [vmem:[%s1279 + $0x10] sm:$0xff]
  %v1283 = vld [vmem:[%s1279 + $0x18] sm:$0xff]
  %s1284 = scalar_lea.vmem %s4, 12
  %v1285 = vld [vmem:[%s1284] sm:$0x1]
  %s1286 = scalar_lea.vmem %s4, 13
  %v1287 = vld [vmem:[%s1286] sm:$0x1]
  %s1288 = scalar_lea.vmem %s4, 14
  %v1289 = vld [vmem:[%s1288] sm:$0x1]
  %s1290 = scalar_lea.vmem %s4, 15
  %v1291 = vld [vmem:[%s1290] sm:$0x1]
  %s1292 = scalar_lea.vmem %s4, 16
  %v1293 = vld [vmem:[%s1292] sm:$0x1]
  %s1294 = scalar_lea.vmem %s4, 17
  %v1295 = vld [vmem:[%s1294] sm:$0x1]
  %v1297 = vperm.slane %v1289, 0
  %v1300 = vsel %vm37, %v1253, 0
  %v1303 = vsel %vm37, %v1254, 0
  %v1306 = vsel %vm37, %v1255, 0
  %v1309 = vsel %vm37, %v1256, 0
  %v1312 = vsel %vm37, %v1257, 0
  %1314 = vmatpush.msra.mxu0 0.0
  %1315 = vmatpush.msra.mxu0 0.0
  %1316 = vmatpush.msra.mxu0 0.0
  %1317 = vmatpush.msra.mxu0 0.0
  %1318 = vmatpush.msra.mxu0 0.0
  %1319 = vmatpush.msra.mxu0 0.0
  %1320 = vmatpush.msra.mxu0 0.0
  %1321 = vmatpush.msra.mxu0 0.0
  %1322 = vmatpush.msra.mxu0 0.0
  %1323 = vmatpush.msra.mxu0 0.0
  %1324 = vmatpush.msra.mxu0 0.0
  %1325 = vmatpush.msra.mxu0 0.0
  %1326 = vmatpush.msra.mxu0 %v1278
  %1327 = vmatpush.msra.mxu0 %v1277
  %1328 = vmatpush.msra.mxu0 %v1276
  %1329 = vmatpush.msra.mxu0 %v1275
  %1330 = vmatmul.f32.gmra.mxu0 %v1300
  %v1331 = vpop.f32.mrf.mxu0
  %v1332 = vadd.f32 %v1297, %v1331
  %1333 = vmatmul.f32.gmra.mxu0 %v1303
  %v1334 = vpop.f32.mrf.mxu0
  %v1335 = vadd.f32 %v1297, %v1334
  %1336 = vmatmul.f32.gmra.mxu0 %v1306
  %v1337 = vpop.f32.mrf.mxu0
  %v1338 = vadd.f32 %v1297, %v1337
  %1339 = vmatmul.f32.gmra.mxu0 %v1309
  %v1340 = vpop.f32.mrf.mxu0
  %v1341 = vadd.f32 %v1297, %v1340
  %1342 = vmatmul.f32.gmra.mxu0 %v1312
  %v1343 = vpop.f32.mrf.mxu0
  %v1344 = vadd.f32 %v1297, %v1343
  %1345 = vdwg.mxu0
  %v1347 = vperm.slane %v1285, 0
  %1349 = vmatpush.msra.mxu0 0.0
  %1350 = vmatpush.msra.mxu0 0.0
  %1351 = vmatpush.msra.mxu0 0.0
  %1352 = vmatpush.msra.mxu0 0.0
  %1353 = vmatpush.msra.mxu0 0.0
  %1354 = vmatpush.msra.mxu0 0.0
  %1355 = vmatpush.msra.mxu0 0.0
  %1356 = vmatpush.msra.mxu0 0.0
  %1357 = vmatpush.msra.mxu0 0.0
  %1358 = vmatpush.msra.mxu0 0.0
  %1359 = vmatpush.msra.mxu0 0.0
  %1360 = vmatpush.msra.mxu0 0.0
  %1361 = vmatpush.msra.mxu0 %v1268
  %1362 = vmatpush.msra.mxu0 %v1267
  %1363 = vmatpush.msra.mxu0 %v1266
  %1364 = vmatpush.msra.mxu0 %v1265
  %1365 = vmatmul.f32.gmra.mxu0 %v1300
  %v1366 = vpop.f32.mrf.mxu0
  %v1367 = vadd.f32 %v1347, %v1366
  %1368 = vmatmul.f32.gmra.mxu0 %v1303
  %v1369 = vpop.f32.mrf.mxu0
  %v1370 = vadd.f32 %v1347, %v1369
  %1371 = vmatmul.f32.gmra.mxu0 %v1306
  %v1372 = vpop.f32.mrf.mxu0
  %v1373 = vadd.f32 %v1347, %v1372
  %1374 = vmatmul.f32.gmra.mxu0 %v1309
  %v1375 = vpop.f32.mrf.mxu0
  %v1376 = vadd.f32 %v1347, %v1375
  %1377 = vmatmul.f32.gmra.mxu0 %v1312
  %v1378 = vpop.f32.mrf.mxu0
  %v1379 = vadd.f32 %v1347, %v1378
  %1380 = vdwg.mxu0
  %v1382 = vperm.slane %v1287, 0
  %1384 = vmatpush.msra.mxu0 0.0
  %1385 = vmatpush.msra.mxu0 0.0
  %1386 = vmatpush.msra.mxu0 0.0
  %1387 = vmatpush.msra.mxu0 0.0
  %1388 = vmatpush.msra.mxu0 0.0
  %1389 = vmatpush.msra.mxu0 0.0
  %1390 = vmatpush.msra.mxu0 0.0
  %1391 = vmatpush.msra.mxu0 0.0
  %1392 = vmatpush.msra.mxu0 0.0
  %1393 = vmatpush.msra.mxu0 0.0
  %1394 = vmatpush.msra.mxu0 0.0
  %1395 = vmatpush.msra.mxu0 0.0
  %1396 = vmatpush.msra.mxu0 %v1273
  %1397 = vmatpush.msra.mxu0 %v1272
  %1398 = vmatpush.msra.mxu0 %v1271
  %1399 = vmatpush.msra.mxu0 %v1270
  %1400 = vmatmul.f32.gmra.mxu0 %v1300
  %v1401 = vpop.f32.mrf.mxu0
  %v1402 = vadd.f32 %v1382, %v1401
  %1403 = vmatmul.f32.gmra.mxu0 %v1303
  %v1404 = vpop.f32.mrf.mxu0
  %v1405 = vadd.f32 %v1382, %v1404
  %1406 = vmatmul.f32.gmra.mxu0 %v1306
  %v1407 = vpop.f32.mrf.mxu0
  %v1408 = vadd.f32 %v1382, %v1407
  %1409 = vmatmul.f32.gmra.mxu0 %v1309
  %v1410 = vpop.f32.mrf.mxu0
  %v1411 = vadd.f32 %v1382, %v1410
  %1412 = vmatmul.f32.gmra.mxu0 %v1312
  %v1413 = vpop.f32.mrf.mxu0
  %v1414 = vadd.f32 %v1382, %v1413
  %1415 = vdwg.mxu0
  %v1417 = vsel %vm37, %v1367, 0
  %v1420 = vsel %vm37, %v1370, 0
  %v1423 = vsel %vm37, %v1373, 0
  %v1426 = vsel %vm37, %v1402, 0
  %v1429 = vsel %vm37, %v1405, 0
  %v1432 = vsel %vm37, %v1408, 0
  %1434 = vmatpush.xpose.msra.mxu0 0.0
  %1435 = vmatpush.xpose.msra.mxu0 0.0
  %1436 = vmatpush.xpose.msra.mxu0 0.0
  %1437 = vmatpush.xpose.msra.mxu0 0.0
  %1438 = vmatpush.xpose.msra.mxu0 0.0
  %1439 = vmatpush.xpose.msra.mxu0 0.0
  %1440 = vmatpush.xpose.msra.mxu0 0.0
  %1441 = vmatpush.xpose.msra.mxu0 0.0
  %1442 = vmatpush.xpose.msra.mxu0 0.0
  %1443 = vmatpush.xpose.msra.mxu0 0.0
  %1444 = vmatpush.xpose.msra.mxu0 0.0
  %1445 = vmatpush.xpose.msra.mxu0 0.0
  %1446 = vmatpush.xpose.msra.mxu0 0.0
  %1447 = vmatpush.xpose.msra.mxu0 %v1432
  %1448 = vmatpush.xpose.msra.mxu0 %v1429
  %1449 = vmatpush.xpose.msra.mxu0 %v1426
  %1450 = vmatmul.f32.gmra.mxu0 %v1417
  %v1451 = vpop.f32.mrf.mxu0
  %v1452 = vadd.f32 0.0, %v1451
  %1453 = vmatmul.f32.gmra.mxu0 %v1420
  %v1454 = vpop.f32.mrf.mxu0
  %v1455 = vadd.f32 0.0, %v1454
  %1456 = vmatmul.f32.gmra.mxu0 %v1423
  %v1457 = vpop.f32.mrf.mxu0
  %v1458 = vadd.f32 0.0, %v1457
  %1459 = vdwg.mxu0
  %v1460 = vmul.f32 %v1452, 0.17677669
  %v1461 = vmul.f32 %v1455, 0.17677669
  %v1462 = vmul.f32 %v1458, 0.17677669
  %v1463 = vld [vmem:[%s1] sm:$0x1]
  %v1465 = vperm.slane %v1463, 0
  %v1467 = vadd.f32 %v1460, %v1465
  %v1468 = vadd.f32 %v1461, %v1465
  %v1469 = vadd.f32 %v1462, %v1465
  %v1470 = vsel %vm248, %v1467, -inf
  %1471 = vmax.xlane.f32.xlu0 %v1470
  %v1472 = vpop.xlane.xlu0 %1471
  %v1473 = vsel %vm248, %v1468, -inf
  %1474 = vmax.xlane.f32.xlu0 %v1473
  %v1475 = vpop.xlane.xlu0 %1474
  %v1476 = vsel %vm764, %v1469, -inf
  %1477 = vmax.xlane.f32.xlu0 %v1476
  %v1478 = vpop.xlane.xlu0 %1477
  %v1479 = vsub.f32 %v1467, %v1472
  %v1480 = vsub.f32 %v1468, %v1475
  %v1481 = vsub.f32 %v1469, %v1478
  %v1482 = vmul.f32 %v1479, 1.442695
  %v1483 = vpow.pop %v1482
  %v1484 = vmul.f32 %v1480, 1.442695
  %v1485 = vpow.pop %v1484
  %v1486 = vmul.f32 %v1481, 1.442695
  %v1487 = vpow.pop %v1486
  %v1488 = vsel %vm248, %v1483, 0.0
  %1489 = vadd.xlane.f32.xlu0 %v1488
  %v1490 = vpop.xlane.xlu0 %1489
  %v1491 = vsel %vm248, %v1485, 0.0
  %1492 = vadd.xlane.f32.xlu0 %v1491
  %v1493 = vpop.xlane.xlu0 %1492
  %v1494 = vsel %vm764, %v1487, 0.0
  %1495 = vadd.xlane.f32.xlu0 %v1494
  %v1496 = vpop.xlane.xlu0 %1495
  %v1497 = vrcp.pop %v1490
  %v1498 = vmul.f32 %v1490, %v1497
  %v1499 = vsub.f32 1.0, %v1498
  %v1500 = vmul.f32 %v1497, %v1499
  %v1501 = vadd.f32 %v1497, %v1500
  %vm1502 = vweird.f32 %v1490
  %vm1503 = vweird.f32 %v1497
  %vm1504 = vmor %vm1502, %vm1503
  %v1505 = vsel %vm1504, %v1497, %v1501
  %v1506 = vand.u32 2147483647, %v1490
  %vm1507 = vcmp.eq.f32.partialorder %v1506, 8.507059e+37
  %v1508 = vand.u32 %v1490, 2147483648
  %v1509 = vor.u32 1.1754944e-38, %v1508
  %v1510 = vsel %vm1507, %v1509, %v1505
  %v1511 = vrcp.pop %v1493
  %v1512 = vmul.f32 %v1493, %v1511
  %v1513 = vsub.f32 1.0, %v1512
  %v1514 = vmul.f32 %v1511, %v1513
  %v1515 = vadd.f32 %v1511, %v1514
  %vm1516 = vweird.f32 %v1493
  %vm1517 = vweird.f32 %v1511
  %vm1518 = vmor %vm1516, %vm1517
  %v1519 = vsel %vm1518, %v1511, %v1515
  %v1520 = vand.u32 2147483647, %v1493
  %vm1521 = vcmp.eq.f32.partialorder %v1520, 8.507059e+37
  %v1522 = vand.u32 %v1493, 2147483648
  %v1523 = vor.u32 1.1754944e-38, %v1522
  %v1524 = vsel %vm1521, %v1523, %v1519
  %v1525 = vrcp.pop %v1496
  %v1526 = vmul.f32 %v1496, %v1525
  %v1527 = vsub.f32 1.0, %v1526
  %v1528 = vmul.f32 %v1525, %v1527
  %v1529 = vadd.f32 %v1525, %v1528
  %vm1530 = vweird.f32 %v1496
  %vm1531 = vweird.f32 %v1525
  %vm1532 = vmor %vm1530, %vm1531
  %v1533 = vsel %vm1532, %v1525, %v1529
  %v1534 = vand.u32 2147483647, %v1496
  %vm1535 = vcmp.eq.f32.partialorder %v1534, 8.507059e+37
  %v1536 = vand.u32 %v1496, 2147483648
  %v1537 = vor.u32 1.1754944e-38, %v1536
  %v1538 = vsel %vm1535, %v1537, %v1533
  %v1539 = vmul.f32 %v1483, %v1510
  %v1540 = vmul.f32 %v1485, %v1524
  %v1541 = vmul.f32 %v1487, %v1538
  %v1542 = vsel %vm248, %v1539, 0.0
  %v1543 = vsel %vm248, %v1540, 0.0
  %v1544 = vsel %vm248, %v1541, 0.0
  %s1545 = scalar_lea.vmem %s8, 96
  %1546 = vst [vmem:[%s1545] sm:$0xff] %v1542
  %1547 = vst [vmem:[%s1545 + $0x8] sm:$0xff] %v1543
  %1548 = vst [vmem:[%s1545 + $0x10] sm:$0x1] %v1544
  %v1550 = vsel %vm248, %v1539, 0
  %v1553 = vsel %vm248, %v1540, 0
  %v1556 = vsel %vm248, %v1541, 0
  %v1559 = vsel %vm264, %v1338, 0
  %1561 = vmatpush.msra.mxu0 0.0
  %1562 = vmatpush.msra.mxu0 0.0
  %1563 = vmatpush.msra.mxu0 0.0
  %1564 = vmatpush.msra.mxu0 0.0
  %1565 = vmatpush.msra.mxu0 0.0
  %1566 = vmatpush.msra.mxu0 0.0
  %1567 = vmatpush.msra.mxu0 0.0
  %1568 = vmatpush.msra.mxu0 0.0
  %1569 = vmatpush.msra.mxu0 0.0
  %1570 = vmatpush.msra.mxu0 0.0
  %1571 = vmatpush.msra.mxu0 0.0
  %1572 = vmatpush.msra.mxu0 0.0
  %1573 = vmatpush.msra.mxu0 0.0
  %1574 = vmatpush.msra.mxu0 %v1559
  %1575 = vmatpush.msra.mxu0 %v1335
  %1576 = vmatpush.msra.mxu0 %v1332
  %1577 = vmatmul.f32.gmra.mxu0 %v1550
  %v1578 = vpop.f32.mrf.mxu0
  %v1579 = vadd.f32 0.0, %v1578
  %1580 = vmatmul.f32.gmra.mxu0 %v1553
  %v1581 = vpop.f32.mrf.mxu0
  %v1582 = vadd.f32 0.0, %v1581
  %1583 = vmatmul.f32.gmra.mxu0 %v1556
  %v1584 = vpop.f32.mrf.mxu0
  %v1585 = vadd.f32 0.0, %v1584
  %1586 = vdwg.mxu0
  %v1589 = vrot.slane %v1373, 1
  %v1590 = vrot.slane %v1376, 1
  %v1591 = vsel %vm307, %v1589, %v1590
  %v1592 = vrot.slane %v1379, 1
  %v1593 = vsel %vm307, %v1590, %v1592
  %v1596 = vrot.slane %v1408, 1
  %v1597 = vrot.slane %v1411, 1
  %v1598 = vsel %vm307, %v1596, %v1597
  %v1599 = vrot.slane %v1414, 1
  %v1600 = vsel %vm307, %v1597, %v1599
  %v1601 = vsel %vm37, %v1591, 0
  %v1603 = vsel %vm37, %v1593, 0
  %v1605 = vsel %vm37, %v1592, 0
  %v1607 = vsel %vm37, %v1598, 0
  %v1609 = vsel %vm37, %v1600, 0
  %v1611 = vsel %vm37, %v1599, 0
  %1613 = vmatpush.xpose.msra.mxu0 0.0
  %1614 = vmatpush.xpose.msra.mxu0 0.0
  %1615 = vmatpush.xpose.msra.mxu0 0.0
  %1616 = vmatpush.xpose.msra.mxu0 0.0
  %1617 = vmatpush.xpose.msra.mxu0 0.0
  %1618 = vmatpush.xpose.msra.mxu0 0.0
  %1619 = vmatpush.xpose.msra.mxu0 0.0
  %1620 = vmatpush.xpose.msra.mxu0 0.0
  %1621 = vmatpush.xpose.msra.mxu0 0.0
  %1622 = vmatpush.xpose.msra.mxu0 0.0
  %1623 = vmatpush.xpose.msra.mxu0 0.0
  %1624 = vmatpush.xpose.msra.mxu0 0.0
  %1625 = vmatpush.xpose.msra.mxu0 0.0
  %1626 = vmatpush.xpose.msra.mxu0 %v1611
  %1627 = vmatpush.xpose.msra.mxu0 %v1609
  %1628 = vmatpush.xpose.msra.mxu0 %v1607
  %1629 = vmatmul.f32.gmra.mxu0 %v1601
  %v1630 = vpop.f32.mrf.mxu0
  %v1631 = vadd.f32 0.0, %v1630
  %1632 = vmatmul.f32.gmra.mxu0 %v1603
  %v1633 = vpop.f32.mrf.mxu0
  %v1634 = vadd.f32 0.0, %v1633
  %1635 = vmatmul.f32.gmra.mxu0 %v1605
  %v1636 = vpop.f32.mrf.mxu0
  %v1637 = vadd.f32 0.0, %v1636
  %1638 = vdwg.mxu0
  %v1639 = vmul.f32 %v1631, 0.17677669
  %v1640 = vmul.f32 %v1634, 0.17677669
  %v1641 = vmul.f32 %v1637, 0.17677669
  %v1642 = vld [vmem:[%s931] sm:$0x1]
  %v1644 = vperm.slane %v1642, 0
  %v1646 = vadd.f32 %v1639, %v1644
  %v1647 = vadd.f32 %v1640, %v1644
  %v1648 = vadd.f32 %v1641, %v1644
  %v1649 = vsel %vm248, %v1646, -inf
  %1650 = vmax.xlane.f32.xlu0 %v1649
  %v1651 = vpop.xlane.xlu0 %1650
  %v1652 = vsel %vm248, %v1647, -inf
  %1653 = vmax.xlane.f32.xlu0 %v1652
  %v1654 = vpop.xlane.xlu0 %1653
  %v1655 = vsel %vm764, %v1648, -inf
  %1656 = vmax.xlane.f32.xlu0 %v1655
  %v1657 = vpop.xlane.xlu0 %1656
  %v1658 = vsub.f32 %v1646, %v1651
  %v1659 = vsub.f32 %v1647, %v1654
  %v1660 = vsub.f32 %v1648, %v1657
  %v1661 = vmul.f32 %v1658, 1.442695
  %v1662 = vpow.pop %v1661
  %v1663 = vmul.f32 %v1659, 1.442695
  %v1664 = vpow.pop %v1663
  %v1665 = vmul.f32 %v1660, 1.442695
  %v1666 = vpow.pop %v1665
  %v1667 = vsel %vm248, %v1662, 0.0
  %1668 = vadd.xlane.f32.xlu0 %v1667
  %v1669 = vpop.xlane.xlu0 %1668
  %v1670 = vsel %vm248, %v1664, 0.0
  %1671 = vadd.xlane.f32.xlu0 %v1670
  %v1672 = vpop.xlane.xlu0 %1671
  %v1673 = vsel %vm764, %v1666, 0.0
  %1674 = vadd.xlane.f32.xlu0 %v1673
  %v1675 = vpop.xlane.xlu0 %1674
  %v1676 = vrcp.pop %v1669
  %v1677 = vmul.f32 %v1669, %v1676
  %v1678 = vsub.f32 1.0, %v1677
  %v1679 = vmul.f32 %v1676, %v1678
  %v1680 = vadd.f32 %v1676, %v1679
  %vm1681 = vweird.f32 %v1669
  %vm1682 = vweird.f32 %v1676
  %vm1683 = vmor %vm1681, %vm1682
  %v1684 = vsel %vm1683, %v1676, %v1680
  %v1685 = vand.u32 2147483647, %v1669
  %vm1686 = vcmp.eq.f32.partialorder %v1685, 8.507059e+37
  %v1687 = vand.u32 %v1669, 2147483648
  %v1688 = vor.u32 1.1754944e-38, %v1687
  %v1689 = vsel %vm1686, %v1688, %v1684
  %v1690 = vrcp.pop %v1672
  %v1691 = vmul.f32 %v1672, %v1690
  %v1692 = vsub.f32 1.0, %v1691
  %v1693 = vmul.f32 %v1690, %v1692
  %v1694 = vadd.f32 %v1690, %v1693
  %vm1695 = vweird.f32 %v1672
  %vm1696 = vweird.f32 %v1690
  %vm1697 = vmor %vm1695, %vm1696
  %v1698 = vsel %vm1697, %v1690, %v1694
  %v1699 = vand.u32 2147483647, %v1672
  %vm1700 = vcmp.eq.f32.partialorder %v1699, 8.507059e+37
  %v1701 = vand.u32 %v1672, 2147483648
  %v1702 = vor.u32 1.1754944e-38, %v1701
  %v1703 = vsel %vm1700, %v1702, %v1698
  %v1704 = vrcp.pop %v1675
  %v1705 = vmul.f32 %v1675, %v1704
  %v1706 = vsub.f32 1.0, %v1705
  %v1707 = vmul.f32 %v1704, %v1706
  %v1708 = vadd.f32 %v1704, %v1707
  %vm1709 = vweird.f32 %v1675
  %vm1710 = vweird.f32 %v1704
  %vm1711 = vmor %vm1709, %vm1710
  %v1712 = vsel %vm1711, %v1704, %v1708
  %v1713 = vand.u32 2147483647, %v1675
  %vm1714 = vcmp.eq.f32.partialorder %v1713, 8.507059e+37
  %v1715 = vand.u32 %v1675, 2147483648
  %v1716 = vor.u32 1.1754944e-38, %v1715
  %v1717 = vsel %vm1714, %v1716, %v1712
  %v1718 = vmul.f32 %v1662, %v1689
  %v1719 = vmul.f32 %v1664, %v1703
  %v1720 = vmul.f32 %v1666, %v1717
  %v1721 = vsel %vm248, %v1718, 0.0
  %v1722 = vsel %vm248, %v1719, 0.0
  %v1723 = vsel %vm248, %v1720, 0.0
  %s1724 = scalar_lea.vmem %s8, 120
  %1725 = vst [vmem:[%s1724] sm:$0xff] %v1721
  %1726 = vst [vmem:[%s1724 + $0x8] sm:$0xff] %v1722
  %1727 = vst [vmem:[%s1724 + $0x10] sm:$0x1] %v1723
  %v1730 = vrot.slane %v1338, 1
  %v1731 = vrot.slane %v1341, 1
  %v1732 = vsel %vm307, %v1730, %v1731
  %v1733 = vrot.slane %v1344, 1
  %v1734 = vsel %vm307, %v1731, %v1733
  %v1738 = vsel %vm248, %v1718, 0
  %v1741 = vsel %vm248, %v1719, 0
  %v1744 = vsel %vm248, %v1720, 0
  %v1746 = vsel %vm264, %v1733, 0
  %1748 = vmatpush.msra.mxu0 0.0
  %1749 = vmatpush.msra.mxu0 0.0
  %1750 = vmatpush.msra.mxu0 0.0
  %1751 = vmatpush.msra.mxu0 0.0
  %1752 = vmatpush.msra.mxu0 0.0
  %1753 = vmatpush.msra.mxu0 0.0
  %1754 = vmatpush.msra.mxu0 0.0
  %1755 = vmatpush.msra.mxu0 0.0
  %1756 = vmatpush.msra.mxu0 0.0
  %1757 = vmatpush.msra.mxu0 0.0
  %1758 = vmatpush.msra.mxu0 0.0
  %1759 = vmatpush.msra.mxu0 0.0
  %1760 = vmatpush.msra.mxu0 0.0
  %1761 = vmatpush.msra.mxu0 %v1746
  %1762 = vmatpush.msra.mxu0 %v1734
  %1763 = vmatpush.msra.mxu0 %v1732
  %1764 = vmatmul.f32.gmra.mxu0 %v1738
  %v1765 = vpop.f32.mrf.mxu0
  %v1766 = vadd.f32 0.0, %v1765
  %1767 = vmatmul.f32.gmra.mxu0 %v1741
  %v1768 = vpop.f32.mrf.mxu0
  %v1769 = vadd.f32 0.0, %v1768
  %1770 = vmatmul.f32.gmra.mxu0 %v1744
  %v1771 = vpop.f32.mrf.mxu0
  %v1772 = vadd.f32 0.0, %v1771
  %1773 = vdwg.mxu0
  %v1777 = vrot.slane %v1766, 7
  %v1778 = vrot.slane %v1769, 7
  %v1779 = vsel %vm264, %v1777, %v1778
  %v1780 = vrot.slane %v1772, 7
  %v1781 = vsel %vm264, %v1778, %v1780
  %v1783 = vsel %vm264, %v1585, %v1777
  %v1785 = vperm.slane %v1291, 0
  %v1788 = vsel %vm37, %v1579, 0
  %v1791 = vsel %vm37, %v1582, 0
  %v1794 = vsel %vm37, %v1783, 0
  %v1796 = vsel %vm37, %v1779, 0
  %v1798 = vsel %vm37, %v1781, 0
  %1800 = vmatpush.msra.mxu0 0.0
  %1801 = vmatpush.msra.mxu0 0.0
  %1802 = vmatpush.msra.mxu0 0.0
  %1803 = vmatpush.msra.mxu0 0.0
  %1804 = vmatpush.msra.mxu0 0.0
  %1805 = vmatpush.msra.mxu0 0.0
  %1806 = vmatpush.msra.mxu0 0.0
  %1807 = vmatpush.msra.mxu0 0.0
  %1808 = vmatpush.msra.mxu0 0.0
  %1809 = vmatpush.msra.mxu0 0.0
  %1810 = vmatpush.msra.mxu0 0.0
  %1811 = vmatpush.msra.mxu0 0.0
  %1812 = vmatpush.msra.mxu0 %v1283
  %1813 = vmatpush.msra.mxu0 %v1282
  %1814 = vmatpush.msra.mxu0 %v1281
  %1815 = vmatpush.msra.mxu0 %v1280
  %1816 = vmatmul.f32.gmra.mxu0 %v1788
  %v1817 = vpop.f32.mrf.mxu0
  %v1818 = vadd.f32 %v1785, %v1817
  %1819 = vmatmul.f32.gmra.mxu0 %v1791
  %v1820 = vpop.f32.mrf.mxu0
  %v1821 = vadd.f32 %v1785, %v1820
  %1822 = vmatmul.f32.gmra.mxu0 %v1794
  %v1823 = vpop.f32.mrf.mxu0
  %v1824 = vadd.f32 %v1785, %v1823
  %1825 = vmatmul.f32.gmra.mxu0 %v1796
  %v1826 = vpop.f32.mrf.mxu0
  %v1827 = vadd.f32 %v1785, %v1826
  %1828 = vmatmul.f32.gmra.mxu0 %v1798
  %v1829 = vpop.f32.mrf.mxu0
  %v1830 = vadd.f32 %v1785, %v1829
  %1831 = vdwg.mxu0
  %v1832 = vmax.f32 %v1818, 0.0
  %v1833 = vmax.f32 %v1821, 0.0
  %v1834 = vmax.f32 %v1824, 0.0
  %v1835 = vmax.f32 %v1827, 0.0
  %v1836 = vmax.f32 %v1830, 0.0
  %v1837 = vadd.f32 %v1832, %v1253
  %v1838 = vadd.f32 %v1833, %v1254
  %v1839 = vadd.f32 %v1834, %v1255
  %v1840 = vadd.f32 %v1835, %v1256
  %v1841 = vadd.f32 %v1836, %v1257
  %v1842 = vsel %vm37, %v1837, 0.0
  %1843 = vadd.xlane.f32.xlu0 %v1842
  %v1844 = vpop.xlane.xlu0 %1843
  %v1845 = vsel %vm37, %v1838, 0.0
  %1846 = vadd.xlane.f32.xlu0 %v1845
  %v1847 = vpop.xlane.xlu0 %1846
  %v1848 = vsel %vm37, %v1839, 0.0
  %1849 = vadd.xlane.f32.xlu0 %v1848
  %v1850 = vpop.xlane.xlu0 %1849
  %v1851 = vsel %vm37, %v1840, 0.0
  %1852 = vadd.xlane.f32.xlu0 %v1851
  %v1853 = vpop.xlane.xlu0 %1852
  %v1854 = vsel %vm50, %v1841, 0.0
  %1855 = vadd.xlane.f32.xlu0 %v1854
  %v1856 = vpop.xlane.xlu0 %1855
  %v1857 = vmul.f32 %v1844, %v60
  %v1858 = vmul.f32 %v1847, %v60
  %v1859 = vmul.f32 %v1850, %v60
  %v1860 = vmul.f32 %v1853, %v60
  %v1861 = vmul.f32 %v1856, %v60
  %v1862 = vsub.f32 %v1837, %v1857
  %v1863 = vsub.f32 %v1838, %v1858
  %v1864 = vsub.f32 %v1839, %v1859
  %v1865 = vsub.f32 %v1840, %v1860
  %v1866 = vsub.f32 %v1841, %v1861
  %v1867 = vmul.f32 %v1862, %v1862
  %v1868 = vmul.f32 %v1863, %v1863
  %v1869 = vmul.f32 %v1864, %v1864
  %v1870 = vmul.f32 %v1865, %v1865
  %v1871 = vmul.f32 %v1866, %v1866
  %v1872 = vsel %vm37, %v1867, 0.0
  %1873 = vadd.xlane.f32.xlu0 %v1872
  %v1874 = vpop.xlane.xlu0 %1873
  %v1875 = vsel %vm37, %v1868, 0.0
  %1876 = vadd.xlane.f32.xlu0 %v1875
  %v1877 = vpop.xlane.xlu0 %1876
  %v1878 = vsel %vm37, %v1869, 0.0
  %1879 = vadd.xlane.f32.xlu0 %v1878
  %v1880 = vpop.xlane.xlu0 %1879
  %v1881 = vsel %vm37, %v1870, 0.0
  %1882 = vadd.xlane.f32.xlu0 %v1881
  %v1883 = vpop.xlane.xlu0 %1882
  %v1884 = vsel %vm50, %v1871, 0.0
  %1885 = vadd.xlane.f32.xlu0 %v1884
  %v1886 = vpop.xlane.xlu0 %1885
  %v1887 = vmul.f32 %v1874, %v60
  %v1888 = vmul.f32 %v1877, %v60
  %v1889 = vmul.f32 %v1880, %v60
  %v1890 = vmul.f32 %v1883, %v60
  %v1891 = vmul.f32 %v1886, %v60
  %v1892 = vadd.f32 %v1887, 1e-05
  %v1893 = vadd.f32 %v1888, 1e-05
  %v1894 = vadd.f32 %v1889, 1e-05
  %v1895 = vadd.f32 %v1890, 1e-05
  %v1896 = vadd.f32 %v1891, 1e-05
  %v1897 = vrsqrt.pop %v1892
  %v1898 = vmul.f32 %v1897, %v1892
  %v1899 = vmul.f32 %v1898, %v1897
  %v1900 = vmul.f32 0.5, %v1899
  %v1901 = vsub.f32 1.5, %v1900
  %v1902 = vmul.f32 %v1897, %v1901
  %vm1903 = vweird.f32 %v1892
  %vm1904 = vweird.f32 %v1897
  %vm1905 = vmor %vm1903, %vm1904
  %v1906 = vsel %vm1905, %v1897, %v1902
  %v1907 = vrsqrt.pop %v1893
  %v1908 = vmul.f32 %v1907, %v1893
  %v1909 = vmul.f32 %v1908, %v1907
  %v1910 = vmul.f32 0.5, %v1909
  %v1911 = vsub.f32 1.5, %v1910
  %v1912 = vmul.f32 %v1907, %v1911
  %vm1913 = vweird.f32 %v1893
  %vm1914 = vweird.f32 %v1907
  %vm1915 = vmor %vm1913, %vm1914
  %v1916 = vsel %vm1915, %v1907, %v1912
  %v1917 = vrsqrt.pop %v1894
  %v1918 = vmul.f32 %v1917, %v1894
  %v1919 = vmul.f32 %v1918, %v1917
  %v1920 = vmul.f32 0.5, %v1919
  %v1921 = vsub.f32 1.5, %v1920
  %v1922 = vmul.f32 %v1917, %v1921
  %vm1923 = vweird.f32 %v1894
  %vm1924 = vweird.f32 %v1917
  %vm1925 = vmor %vm1923, %vm1924
  %v1926 = vsel %vm1925, %v1917, %v1922
  %v1927 = vrsqrt.pop %v1895
  %v1928 = vmul.f32 %v1927, %v1895
  %v1929 = vmul.f32 %v1928, %v1927
  %v1930 = vmul.f32 0.5, %v1929
  %v1931 = vsub.f32 1.5, %v1930
  %v1932 = vmul.f32 %v1927, %v1931
  %vm1933 = vweird.f32 %v1895
  %vm1934 = vweird.f32 %v1927
  %vm1935 = vmor %vm1933, %vm1934
  %v1936 = vsel %vm1935, %v1927, %v1932
  %v1937 = vrsqrt.pop %v1896
  %v1938 = vmul.f32 %v1937, %v1896
  %v1939 = vmul.f32 %v1938, %v1937
  %v1940 = vmul.f32 0.5, %v1939
  %v1941 = vsub.f32 1.5, %v1940
  %v1942 = vmul.f32 %v1937, %v1941
  %vm1943 = vweird.f32 %v1896
  %vm1944 = vweird.f32 %v1937
  %vm1945 = vmor %vm1943, %vm1944
  %v1946 = vsel %vm1945, %v1937, %v1942
  %v1947 = vmul.f32 %v1862, %v1906
  %v1948 = vmul.f32 %v1863, %v1916
  %v1949 = vmul.f32 %v1864, %v1926
  %v1950 = vmul.f32 %v1865, %v1936
  %v1951 = vmul.f32 %v1866, %v1946
  %v1953 = vperm.slane %v1293, 0
  %v1955 = vmul.f32 %v1947, %v1953
  %v1956 = vmul.f32 %v1948, %v1953
  %v1957 = vmul.f32 %v1949, %v1953
  %v1958 = vmul.f32 %v1950, %v1953
  %v1959 = vmul.f32 %v1951, %v1953
  %v1961 = vperm.slane %v1295, 0
  %v1963 = vadd.f32 %v1955, %v1961
  %v1964 = vadd.f32 %v1956, %v1961
  %v1965 = vadd.f32 %v1957, %v1961
  %v1966 = vadd.f32 %v1958, %v1961
  %v1967 = vadd.f32 %v1959, %v1961
  %s1968 = scalar_lea.vmem %s7, 120
  %1969 = vst.msk [vmem:[%s1968] sm:$0xff] %vm37, %v1963
  %1970 = vst.msk [vmem:[%s1968 + $0x8] sm:$0xff] %vm37, %v1964
  %1971 = vst.msk [vmem:[%s1968 + $0x10] sm:$0xff] %vm37, %v1965
  %1972 = vst.msk [vmem:[%s1968 + $0x18] sm:$0xff] %vm37, %v1966
  %1973 = vst.msk [vmem:[%s1968 + $0x20] sm:$0x3] %vm50, %v1967
  %v1974 = vsel %vm264, %v1963, %v1965
  %v1975 = vld [vmem:[%s5] sm:$0xff]
  %v1976 = vld [vmem:[%s5 + $0x8] sm:$0xff]
  %v1977 = vld [vmem:[%s5 + $0x10] sm:$0xff]
  %v1978 = vld [vmem:[%s5 + $0x18] sm:$0xff]
  %s1979 = scalar_lea.vmem %s6, 2
  %v1980 = vld [vmem:[%s1979] sm:$0x1]
  %v1982 = vperm.slane %v1980, 0
  %v1985 = vsel %vm37, %v1974, 0
  %1987 = vmatpush.msra.mxu0 0.0
  %1988 = vmatpush.msra.mxu0 0.0
  %1989 = vmatpush.msra.mxu0 0.0
  %1990 = vmatpush.msra.mxu0 0.0
  %1991 = vmatpush.msra.mxu0 0.0
  %1992 = vmatpush.msra.mxu0 0.0
  %1993 = vmatpush.msra.mxu0 0.0
  %1994 = vmatpush.msra.mxu0 0.0
  %1995 = vmatpush.msra.mxu0 0.0
  %1996 = vmatpush.msra.mxu0 0.0
  %1997 = vmatpush.msra.mxu0 0.0
  %1998 = vmatpush.msra.mxu0 0.0
  %1999 = vmatpush.msra.mxu0 %v1978
  %2000 = vmatpush.msra.mxu0 %v1977
  %2001 = vmatpush.msra.mxu0 %v1976
  %2002 = vmatpush.msra.mxu0 %v1975
  %2003 = vmatmul.f32.gmra.mxu0 %v1985
  %v2004 = vpop.f32.mrf.mxu0
  %v2005 = vadd.f32 %v1982, %v2004
  %2006 = vdwg.mxu0
  %v2007 = vmax.f32 %v2005, 0.0
  %s2008 = scalar_lea.vmem %s5, 32
  %v2009 = vld [vmem:[%s2008] sm:$0xff]
  %v2010 = vld [vmem:[%s2008 + $0x8] sm:$0xff]
  %v2011 = vld [vmem:[%s2008 + $0x10] sm:$0xff]
  %v2012 = vld [vmem:[%s2008 + $0x18] sm:$0xff]
  %s2013 = scalar_lea.vmem %s6, 3
  %v2014 = vld [vmem:[%s2013] sm:$0x1]
  %v2016 = vperm.slane %v2014, 0
  %v2019 = vsel %vm37, %v2007, 0
  %2021 = vmatpush.msra.mxu0 0.0
  %2022 = vmatpush.msra.mxu0 0.0
  %2023 = vmatpush.msra.mxu0 0.0
  %2024 = vmatpush.msra.mxu0 0.0
  %2025 = vmatpush.msra.mxu0 0.0
  %2026 = vmatpush.msra.mxu0 0.0
  %2027 = vmatpush.msra.mxu0 0.0
  %2028 = vmatpush.msra.mxu0 0.0
  %2029 = vmatpush.msra.mxu0 0.0
  %2030 = vmatpush.msra.mxu0 0.0
  %2031 = vmatpush.msra.mxu0 0.0
  %2032 = vmatpush.msra.mxu0 0.0
  %2033 = vmatpush.msra.mxu0 %v2012
  %2034 = vmatpush.msra.mxu0 %v2011
  %2035 = vmatpush.msra.mxu0 %v2010
  %2036 = vmatpush.msra.mxu0 %v2009
  %2037 = vmatmul.f32.gmra.mxu0 %v2019
  %v2038 = vpop.f32.mrf.mxu0
  %v2039 = vadd.f32 %v2016, %v2038
  %2040 = vdwg.mxu0
  %2041 = vst.msk [vmem:[%s9] sm:$0x3] %vm50, %v2039
  // Predicated region
  $region30: #{gct_forward.1} parent=0 // pred_check
    _
  $region31: #{gct_forward.1} parent=0 // pred_check_branch
    %2043 = sbr.rel (0) target = $region33
  $region32: #{gct_forward.1} parent=0 // pred_region
    _
  $region33: #{gct_forward.1} parent=0 // pred_fallthru
    _
  // Predicated region
  $region34: #{gct_forward.1} parent=0 // pred_check
    _
  $region35: #{gct_forward.1} parent=0 // pred_check_branch
    %2045 = sbr.rel (0) target = $region37
  $region36: #{gct_forward.1} parent=0 // pred_region
    _
  $region37: #{gct_forward.1} parent=0 // pred_fallthru
    _
  // Predicated region
  $region38: #{gct_forward.1} parent=0 // pred_check
    _
  $region39: #{gct_forward.1} parent=0 // pred_check_branch
    %2047 = sbr.rel (0) target = $region41
  $region40: #{gct_forward.1} parent=0 // pred_region
    _
  $region41: #{gct_forward.1} parent=0 // pred_fallthru
    _
  // Predicated region
  $region42: #{gct_forward.1} parent=0 // pred_check
    _
  $region43: #{gct_forward.1} parent=0 // pred_check_branch
    %2049 = sbr.rel (0) target = $region45
  $region44: #{gct_forward.1} parent=0 // pred_region
    _
  $region45: #{gct_forward.1} parent=0 // pred_fallthru
    _
  // Predicated region
  $region46: #{gct_forward.1} parent=0 // pred_check
    _
  $region47: #{gct_forward.1} parent=0 // pred_check_branch
    %2051 = sbr.rel (0) target = $region49
  $region48: #{gct_forward.1} parent=0 // pred_region
    _
  $region49: #{gct_forward.1} parent=0 // pred_fallthru
    _
  // Predicated region
  $region50: #{gct_forward.1} parent=0 // pred_check
    _
  $region51: #{gct_forward.1} parent=0 // pred_check_branch
    %2053 = sbr.rel (0) target = $region53
  $region52: #{gct_forward.1} parent=0 // pred_region
    _
  $region53: #{gct_forward.1} parent=0 // pred_fallthru
    _

</llo_original>
